<compile_context>
chip_gen: v6e
topology: v6e:2x2x1
jax: 0.10.0
libtpu: 0.0.40
codegen_flags: <defaults>
</compile_context>

<pallas_src>
import jax
import jax.numpy as jnp
from jax.experimental import pallas as pl
from jax.experimental.pallas import tpu as pltpu


# -----------------------------------------------------------------------------
# Module configuration: EncoderMNIST(n_channel=1, latent_dim=8,
#   quantize_latents=True, stochastic=True, ls=1.0, input_size=784, L=4,
#   q_limits=(-1, 1))
# -----------------------------------------------------------------------------
INPUT_SIZE = 784                      # 1 x 28 x 28 (MNIST)
LS = 1.0
FINAL_LAYER_WIDTH = int(LS * 128)     # 128
LATENT_DIM = 8
L = 4
Q_LIMITS = (-1.0, 1.0)
BN_EPS = 1e-5                         # nn.BatchNorm1d default eps
LEAKY_SLOPE = 0.01                    # nn.LeakyReLU() default

# TODO(synk): generate_centers(L, q_limits) is not provided in the spec;
# assuming uniformly spaced centers over q_limits (as in mitscha/dplc).
ALPHA = (Q_LIMITS[1] - Q_LIMITS[0]) / (L - 1)   # dither magnitude / center step
CENTERS = tuple(Q_LIMITS[0] + i * ALPHA for i in range(L))

LAYER_WIDTHS = [INPUT_SIZE,
                4 * FINAL_LAYER_WIDTH,   # 512
                2 * FINAL_LAYER_WIDTH,   # 256
                FINAL_LAYER_WIDTH,       # 128
                FINAL_LAYER_WIDTH,       # 128
                LATENT_DIM]              # 8


# -----------------------------------------------------------------------------
# Fused kernel: full MLP + BN + act + dither + quantize for one batch row-tile
# -----------------------------------------------------------------------------
def _encoder_kernel(x_ref, u_ref,
                    w1, b1, w2, b2, w3, b3, w4, b4, w5, b5,
                    o_ref):
    # Linear with BN(eval) fully folded: scale already inside bf16 weights,
    # shift carries (linear_bias - mean) * scale + beta.  MXU bf16 GEMM with
    # f32 accumulation; epilogue stays f32.
    def lin(a_bf16, w_ref, b_ref):
        h = jnp.dot(a_bf16, w_ref[...], preferred_element_type=jnp.float32)
        return h + b_ref[...]

    def leaky(h):
        return jnp.where(h > 0, h, LEAKY_SLOPE * h)

    a = x_ref[...]                                   # already bf16
    a = leaky(lin(a, w1, b1)).astype(jnp.bfloat16)
    a = leaky(lin(a, w2, b2)).astype(jnp.bfloat16)
    a = leaky(lin(a, w3, b3)).astype(jnp.bfloat16)
    a = leaky(lin(a, w4, b4)).astype(jnp.bfloat16)
    z = jnp.tanh(lin(a, w5, b5))                     # (tm, LATENT_DIM) f32

    # stochastic: x = x + u
    z = z + u_ref[...]

    # Quantizer forward value = nearest center.  Closed-form uniform snap
    # (centers are uniformly spaced over q_limits).  Tie-break at exact
    # midpoints uses round-half-even instead of torch.min's first-index rule;
    # measure-zero with continuous dither.
    idx = jnp.clip(jnp.round((z - Q_LIMITS[0]) / ALPHA), 0.0, float(L - 1))
    o_ref[...] = idx * ALPHA + Q_LIMITS[0]


def _pick_tm(n_rows):
    # Tiny batch: one full-batch block (block dims == full array dims is always
    # a legal BlockSpec, regardless of (8,128) divisibility).
    if n_rows <= 128:
        return n_rows
    # Otherwise keep the MXU rows full and keep >= 2 grid steps so both v7x
    # TensorCores get work; Pallas masks the ragged last block via cdiv grid.
    for t in (512, 256, 128):
        if n_rows >= 2 * t:
            return t
    return 128


# -----------------------------------------------------------------------------
# Forward wrapper (matches EncoderMNIST.forward(x, u))
# -----------------------------------------------------------------------------
@jax.jit
def encoder_mnist_forward(x, u, params):
    N = x.shape[0]
    # x.view(-1, input_size) fused with the bf16 cast: single pass over x,
    # half the HBM bytes of the old f32 input stream.  No batch padding.
    xf = x.reshape(N, INPUT_SIZE).astype(jnp.bfloat16)
    uf = u.astype(jnp.float32)                       # (N, LATENT_DIM), no pad

    tm = _pick_tm(N)
    grid = (pl.cdiv(N, tm),)

    # Per-layer operands: bf16 weight with BN scale folded in, f32 shift.
    ops = []
    for l in range(5):
        w = params[f"w{l + 1}"]
        b = params[f"b{l + 1}"]
        g = params[f"gamma{l + 1}"]
        be = params[f"beta{l + 1}"]
        mu = params[f"mean{l + 1}"]
        var = params[f"var{l + 1}"]
        s = g * jax.lax.rsqrt(var + BN_EPS)          # BN eval-mode scale
        b_eff = (b - mu) * s + be                    # BN shift + linear bias
        w_scaled = (w * s[None, :]).astype(jnp.bfloat16)   # fold scale into W
        ops += [w_scaled, b_eff.reshape(1, -1).astype(jnp.float32)]

    in_specs = [pl.BlockSpec((tm, INPUT_SIZE), lambda i: (i, 0)),   # x (bf16)
                pl.BlockSpec((tm, LATENT_DIM), lambda i: (i, 0))]   # u (f32)
    for arr in ops:                                   # VMEM-resident params
        in_specs.append(pl.BlockSpec(arr.shape, lambda i: (0, 0)))

    out = pl.pallas_call(
        _encoder_kernel,
        out_shape=jax.ShapeDtypeStruct((N, LATENT_DIM), jnp.float32),
        grid_spec=pltpu.PrefetchScalarGridSpec(
            num_scalar_prefetch=0,
            grid=grid,
            in_specs=in_specs,
            out_specs=pl.BlockSpec((tm, LATENT_DIM), lambda i: (i, 0)),
        ),
        compiler_params=pltpu.CompilerParams(
            dimension_semantics=("parallel",)),
    )(xf, uf, *ops)

    return out


# -----------------------------------------------------------------------------
# Deterministic parameter construction (PyTorch-shaped semantics, eval-mode BN)
# -----------------------------------------------------------------------------
def init_params(key):
    p = {}
    ks = jax.random.split(key, 5 * 6)
    it = iter(ks)
    for l in range(5):
        fan_in, fan_out = LAYER_WIDTHS[l], LAYER_WIDTHS[l + 1]
        p[f"w{l + 1}"] = 0.05 * jax.random.normal(next(it), (fan_in, fan_out), jnp.float32)
        p[f"b{l + 1}"] = 0.02 * jax.random.normal(next(it), (fan_out,), jnp.float32)
        p[f"gamma{l + 1}"] = 1.0 + 0.1 * jax.random.normal(next(it), (fan_out,), jnp.float32)
        p[f"beta{l + 1}"] = 0.05 * jax.random.normal(next(it), (fan_out,), jnp.float32)
        p[f"mean{l + 1}"] = 0.05 * jax.random.normal(next(it), (fan_out,), jnp.float32)
        p[f"var{l + 1}"] = 1.0 + 0.1 * jax.random.uniform(next(it), (fan_out,), jnp.float32)
    return p


if __name__ == "__main__":
    key = jax.random.PRNGKey(0)
    kx, ku, kp = jax.random.split(key, 3)

    batch = 4
    x = jax.random.normal(kx, (batch, 1, 28, 28), jnp.float32)      # MNIST-shaped
    # stochastic dither noise u ~ U(-alpha/2, alpha/2), passed to forward(x, u)
    u = ALPHA * (jax.random.uniform(ku, (batch, LATENT_DIM), jnp.float32) - 0.5)
    params = init_params(kp)

    out = encoder_mnist_forward(x, u, params)
    out = jax.block_until_ready(out)

    assert out.shape == (batch, LATENT_DIM), out.shape
    assert bool(jnp.all(jnp.isfinite(out)))
    # Output must be hard-quantized: every value equals one of the centers.
    cs = jnp.asarray(CENTERS, jnp.float32)
    assert bool(jnp.all(jnp.min(jnp.abs(out[..., None] - cs), axis=-1) < 1e-6))
    print("KERNEL_OK")
</pallas_src>

<mosaic_0001>
module attributes {stable_mosaic.version = 11 : i64} {
  func.func @_encoder_kernel(%arg0: i32, %arg1: memref<4x784xbf16, #tpu.memory_space<vmem>>, %arg2: memref<4x8xf32, #tpu.memory_space<vmem>>, %arg3: memref<784x512xbf16, #tpu.memory_space<vmem>>, %arg4: memref<1x512xf32, #tpu.memory_space<vmem>>, %arg5: memref<512x256xbf16, #tpu.memory_space<vmem>>, %arg6: memref<1x256xf32, #tpu.memory_space<vmem>>, %arg7: memref<256x128xbf16, #tpu.memory_space<vmem>>, %arg8: memref<1x128xf32, #tpu.memory_space<vmem>>, %arg9: memref<128x128xbf16, #tpu.memory_space<vmem>>, %arg10: memref<1x128xf32, #tpu.memory_space<vmem>>, %arg11: memref<128x8xbf16, #tpu.memory_space<vmem>>, %arg12: memref<1x8xf32, #tpu.memory_space<vmem>>, %arg13: memref<4x8xf32, #tpu.memory_space<vmem>>) attributes {dimension_semantics = [#tpu.dimension_semantics<parallel>], iteration_bounds = array<i64: 1>, scalar_prefetch = 0 : i64, scratch_operands = 0 : i64, tpu.core_type = #tpu.core_type<tc>, window_params = [{transform_indices = @transform_0, window_bounds = array<i64: 4, 784>}, {transform_indices = @transform_1, window_bounds = array<i64: 4, 8>}, {pipeline_mode = #tpu.pipeline_mode<synchronous>, transform_indices = @transform_2, window_bounds = array<i64: 784, 512>}, {pipeline_mode = #tpu.pipeline_mode<synchronous>, transform_indices = @transform_3, window_bounds = array<i64: 1, 512>}, {pipeline_mode = #tpu.pipeline_mode<synchronous>, transform_indices = @transform_4, window_bounds = array<i64: 512, 256>}, {pipeline_mode = #tpu.pipeline_mode<synchronous>, transform_indices = @transform_5, window_bounds = array<i64: 1, 256>}, {pipeline_mode = #tpu.pipeline_mode<synchronous>, transform_indices = @transform_6, window_bounds = array<i64: 256, 128>}, {pipeline_mode = #tpu.pipeline_mode<synchronous>, transform_indices = @transform_7, window_bounds = array<i64: 1, 128>}, {pipeline_mode = #tpu.pipeline_mode<synchronous>, transform_indices = @transform_8, window_bounds = array<i64: 128, 128>}, {pipeline_mode = #tpu.pipeline_mode<synchronous>, transform_indices = @transform_9, window_bounds = array<i64: 1, 128>}, {pipeline_mode = #tpu.pipeline_mode<synchronous>, transform_indices = @transform_10, window_bounds = array<i64: 128, 8>}, {pipeline_mode = #tpu.pipeline_mode<synchronous>, transform_indices = @transform_11, window_bounds = array<i64: 1, 8>}, {transform_indices = @transform_12, window_bounds = array<i64: 4, 8>}]} {
    %c0 = arith.constant 0 : index
    %c0_0 = arith.constant 0 : index
    %0 = vector.load %arg1[%c0, %c0_0] : memref<4x784xbf16, #tpu.memory_space<vmem>>, vector<4x784xbf16>
    %c0_1 = arith.constant 0 : index
    %c0_2 = arith.constant 0 : index
    %1 = vector.load %arg3[%c0_1, %c0_2] : memref<784x512xbf16, #tpu.memory_space<vmem>>, vector<784x512xbf16>
    %cst = arith.constant dense<0.000000e+00> : vector<4x512xf32>
    %2 = tpu.matmul %0, %1, %cst {dimension_numbers = #tpu.dot_dimension_numbers<[1], [0], [0], [1], [0, 0, 1, 1], [], []>} : vector<4x784xbf16>, vector<784x512xbf16>, vector<4x512xf32> -> vector<4x512xf32>
    %c0_3 = arith.constant 0 : index
    %c0_4 = arith.constant 0 : index
    %3 = vector.load %arg4[%c0_3, %c0_4] : memref<1x512xf32, #tpu.memory_space<vmem>>, vector<1x512xf32>
    %4 = vector.broadcast %3 : vector<1x512xf32> to vector<4x512xf32>
    %5 = arith.addf %2, %4 : vector<4x512xf32>
    %cst_5 = arith.constant 0.000000e+00 : f32
    %6 = vector.broadcast %cst_5 : f32 to vector<4x512xf32>
    %7 = arith.cmpf ogt, %5, %6 : vector<4x512xf32>
    %cst_6 = arith.constant 0.00999999977 : f32
    %8 = vector.broadcast %cst_6 : f32 to vector<4x512xf32>
    %9 = arith.mulf %8, %5 : vector<4x512xf32>
    %10 = arith.select %7, %5, %9 : vector<4x512xi1>, vector<4x512xf32>
    %11 = arith.truncf %10 : vector<4x512xf32> to vector<4x512xbf16>
    %c0_7 = arith.constant 0 : index
    %c0_8 = arith.constant 0 : index
    %12 = vector.load %arg5[%c0_7, %c0_8] : memref<512x256xbf16, #tpu.memory_space<vmem>>, vector<512x256xbf16>
    %cst_9 = arith.constant dense<0.000000e+00> : vector<4x256xf32>
    %13 = tpu.matmul %11, %12, %cst_9 {dimension_numbers = #tpu.dot_dimension_numbers<[1], [0], [0], [1], [0, 0, 1, 1], [], []>} : vector<4x512xbf16>, vector<512x256xbf16>, vector<4x256xf32> -> vector<4x256xf32>
    %c0_10 = arith.constant 0 : index
    %c0_11 = arith.constant 0 : index
    %14 = vector.load %arg6[%c0_10, %c0_11] : memref<1x256xf32, #tpu.memory_space<vmem>>, vector<1x256xf32>
    %15 = vector.broadcast %14 : vector<1x256xf32> to vector<4x256xf32>
    %16 = arith.addf %13, %15 : vector<4x256xf32>
    %cst_12 = arith.constant 0.000000e+00 : f32
    %17 = vector.broadcast %cst_12 : f32 to vector<4x256xf32>
    %18 = arith.cmpf ogt, %16, %17 : vector<4x256xf32>
    %cst_13 = arith.constant 0.00999999977 : f32
    %19 = vector.broadcast %cst_13 : f32 to vector<4x256xf32>
    %20 = arith.mulf %19, %16 : vector<4x256xf32>
    %21 = arith.select %18, %16, %20 : vector<4x256xi1>, vector<4x256xf32>
    %22 = arith.truncf %21 : vector<4x256xf32> to vector<4x256xbf16>
    %c0_14 = arith.constant 0 : index
    %c0_15 = arith.constant 0 : index
    %23 = vector.load %arg7[%c0_14, %c0_15] : memref<256x128xbf16, #tpu.memory_space<vmem>>, vector<256x128xbf16>
    %cst_16 = arith.constant dense<0.000000e+00> : vector<4x128xf32>
    %24 = tpu.matmul %22, %23, %cst_16 {dimension_numbers = #tpu.dot_dimension_numbers<[1], [0], [0], [1], [0, 0, 1, 1], [], []>} : vector<4x256xbf16>, vector<256x128xbf16>, vector<4x128xf32> -> vector<4x128xf32>
    %c0_17 = arith.constant 0 : index
    %c0_18 = arith.constant 0 : index
    %25 = vector.load %arg8[%c0_17, %c0_18] : memref<1x128xf32, #tpu.memory_space<vmem>>, vector<1x128xf32>
    %26 = vector.broadcast %25 : vector<1x128xf32> to vector<4x128xf32>
    %27 = arith.addf %24, %26 : vector<4x128xf32>
    %cst_19 = arith.constant 0.000000e+00 : f32
    %28 = vector.broadcast %cst_19 : f32 to vector<4x128xf32>
    %29 = arith.cmpf ogt, %27, %28 : vector<4x128xf32>
    %cst_20 = arith.constant 0.00999999977 : f32
    %30 = vector.broadcast %cst_20 : f32 to vector<4x128xf32>
    %31 = arith.mulf %30, %27 : vector<4x128xf32>
    %32 = arith.select %29, %27, %31 : vector<4x128xi1>, vector<4x128xf32>
    %33 = arith.truncf %32 : vector<4x128xf32> to vector<4x128xbf16>
    %c0_21 = arith.constant 0 : index
    %c0_22 = arith.constant 0 : index
    %34 = vector.load %arg9[%c0_21, %c0_22] : memref<128x128xbf16, #tpu.memory_space<vmem>>, vector<128x128xbf16>
    %cst_23 = arith.constant dense<0.000000e+00> : vector<4x128xf32>
    %35 = tpu.matmul %33, %34, %cst_23 {dimension_numbers = #tpu.dot_dimension_numbers<[1], [0], [0], [1], [0, 0, 1, 1], [], []>} : vector<4x128xbf16>, vector<128x128xbf16>, vector<4x128xf32> -> vector<4x128xf32>
    %c0_24 = arith.constant 0 : index
    %c0_25 = arith.constant 0 : index
    %36 = vector.load %arg10[%c0_24, %c0_25] : memref<1x128xf32, #tpu.memory_space<vmem>>, vector<1x128xf32>
    %37 = vector.broadcast %36 : vector<1x128xf32> to vector<4x128xf32>
    %38 = arith.addf %35, %37 : vector<4x128xf32>
    %cst_26 = arith.constant 0.000000e+00 : f32
    %39 = vector.broadcast %cst_26 : f32 to vector<4x128xf32>
    %40 = arith.cmpf ogt, %38, %39 : vector<4x128xf32>
    %cst_27 = arith.constant 0.00999999977 : f32
    %41 = vector.broadcast %cst_27 : f32 to vector<4x128xf32>
    %42 = arith.mulf %41, %38 : vector<4x128xf32>
    %43 = arith.select %40, %38, %42 : vector<4x128xi1>, vector<4x128xf32>
    %44 = arith.truncf %43 : vector<4x128xf32> to vector<4x128xbf16>
    %c0_28 = arith.constant 0 : index
    %c0_29 = arith.constant 0 : index
    %45 = vector.load %arg11[%c0_28, %c0_29] : memref<128x8xbf16, #tpu.memory_space<vmem>>, vector<128x8xbf16>
    %cst_30 = arith.constant dense<0.000000e+00> : vector<4x8xf32>
    %46 = tpu.matmul %44, %45, %cst_30 {dimension_numbers = #tpu.dot_dimension_numbers<[1], [0], [0], [1], [0, 0, 1, 1], [], []>} : vector<4x128xbf16>, vector<128x8xbf16>, vector<4x8xf32> -> vector<4x8xf32>
    %c0_31 = arith.constant 0 : index
    %c0_32 = arith.constant 0 : index
    %47 = vector.load %arg12[%c0_31, %c0_32] : memref<1x8xf32, #tpu.memory_space<vmem>>, vector<1x8xf32>
    %48 = vector.broadcast %47 : vector<1x8xf32> to vector<4x8xf32>
    %49 = arith.addf %46, %48 : vector<4x8xf32>
    %50 = math.tanh %49 : vector<4x8xf32>
    %c0_33 = arith.constant 0 : index
    %c0_34 = arith.constant 0 : index
    %51 = vector.load %arg2[%c0_33, %c0_34] : memref<4x8xf32, #tpu.memory_space<vmem>>, vector<4x8xf32>
    %52 = arith.addf %50, %51 : vector<4x8xf32>
    %cst_35 = arith.constant -1.000000e+00 : f32
    %53 = vector.broadcast %cst_35 : f32 to vector<4x8xf32>
    %54 = arith.subf %52, %53 : vector<4x8xf32>
    %cst_36 = arith.constant 0.666666686 : f32
    %55 = vector.broadcast %cst_36 : f32 to vector<4x8xf32>
    %56 = arith.divf %54, %55 : vector<4x8xf32>
    %57 = math.roundeven %56 : vector<4x8xf32>
    %cst_37 = arith.constant 0.000000e+00 : f32
    %cst_38 = arith.constant 3.000000e+00 : f32
    %58 = vector.broadcast %cst_37 : f32 to vector<4x8xf32>
    %59 = arith.maximumf %58, %57 : vector<4x8xf32>
    %60 = vector.broadcast %cst_38 : f32 to vector<4x8xf32>
    %61 = arith.minimumf %60, %59 : vector<4x8xf32>
    %cst_39 = arith.constant 0.666666686 : f32
    %62 = vector.broadcast %cst_39 : f32 to vector<4x8xf32>
    %63 = arith.mulf %61, %62 : vector<4x8xf32>
    %cst_40 = arith.constant -1.000000e+00 : f32
    %64 = vector.broadcast %cst_40 : f32 to vector<4x8xf32>
    %65 = arith.addf %63, %64 : vector<4x8xf32>
    %c0_41 = arith.constant 0 : index
    %c0_42 = arith.constant 0 : index
    %66 = vector.load %arg13[%c0_41, %c0_42] : memref<4x8xf32, #tpu.memory_space<vmem>>, vector<4x8xf32>
    tpu.vector_store %arg13[%c0_41, %c0_42], %65 {strides = array<i32>} : memref<4x8xf32, #tpu.memory_space<vmem>>, vector<4x8xf32>,
    return
  }
  func.func @transform_0(%arg0: i32) -> (i32, i32) {
    %c0_i32 = arith.constant 0 : i32
    %c0_i32_0 = arith.constant 0 : i32
    return %arg0, %c0_i32 : i32, i32
  }
  func.func @transform_1(%arg0: i32) -> (i32, i32) {
    %c0_i32 = arith.constant 0 : i32
    %c0_i32_0 = arith.constant 0 : i32
    return %arg0, %c0_i32 : i32, i32
  }
  func.func @transform_2(%arg0: i32) -> (i32, i32) {
    %c0_i32 = arith.constant 0 : i32
    %c0_i32_0 = arith.constant 0 : i32
    %c0_i32_1 = arith.constant 0 : i32
    return %c0_i32, %c0_i32_0 : i32, i32
  }
  func.func @transform_3(%arg0: i32) -> (i32, i32) {
    %c0_i32 = arith.constant 0 : i32
    %c0_i32_0 = arith.constant 0 : i32
    %c0_i32_1 = arith.constant 0 : i32
    return %c0_i32, %c0_i32_0 : i32, i32
  }
  func.func @transform_4(%arg0: i32) -> (i32, i32) {
    %c0_i32 = arith.constant 0 : i32
    %c0_i32_0 = arith.constant 0 : i32
    %c0_i32_1 = arith.constant 0 : i32
    return %c0_i32, %c0_i32_0 : i32, i32
  }
  func.func @transform_5(%arg0: i32) -> (i32, i32) {
    %c0_i32 = arith.constant 0 : i32
    %c0_i32_0 = arith.constant 0 : i32
    %c0_i32_1 = arith.constant 0 : i32
    return %c0_i32, %c0_i32_0 : i32, i32
  }
  func.func @transform_6(%arg0: i32) -> (i32, i32) {
    %c0_i32 = arith.constant 0 : i32
    %c0_i32_0 = arith.constant 0 : i32
    %c0_i32_1 = arith.constant 0 : i32
    return %c0_i32, %c0_i32_0 : i32, i32
  }
  func.func @transform_7(%arg0: i32) -> (i32, i32) {
    %c0_i32 = arith.constant 0 : i32
    %c0_i32_0 = arith.constant 0 : i32
    %c0_i32_1 = arith.constant 0 : i32
    return %c0_i32, %c0_i32_0 : i32, i32
  }
  func.func @transform_8(%arg0: i32) -> (i32, i32) {
    %c0_i32 = arith.constant 0 : i32
    %c0_i32_0 = arith.constant 0 : i32
    %c0_i32_1 = arith.constant 0 : i32
    return %c0_i32, %c0_i32_0 : i32, i32
  }
  func.func @transform_9(%arg0: i32) -> (i32, i32) {
    %c0_i32 = arith.constant 0 : i32
    %c0_i32_0 = arith.constant 0 : i32
    %c0_i32_1 = arith.constant 0 : i32
    return %c0_i32, %c0_i32_0 : i32, i32
  }
  func.func @transform_10(%arg0: i32) -> (i32, i32) {
    %c0_i32 = arith.constant 0 : i32
    %c0_i32_0 = arith.constant 0 : i32
    %c0_i32_1 = arith.constant 0 : i32
    return %c0_i32, %c0_i32_0 : i32, i32
  }
  func.func @transform_11(%arg0: i32) -> (i32, i32) {
    %c0_i32 = arith.constant 0 : i32
    %c0_i32_0 = arith.constant 0 : i32
    %c0_i32_1 = arith.constant 0 : i32
    return %c0_i32, %c0_i32_0 : i32, i32
  }
  func.func @transform_12(%arg0: i32) -> (i32, i32) {
    %c0_i32 = arith.constant 0 : i32
    %c0_i32_0 = arith.constant 0 : i32
    return %arg0, %c0_i32 : i32, i32
  }
}

</mosaic_0001>

<llo_original>
// kernel: encoder_mnist_forward.1
$region0: #{encoder_mnist_forward.1}
  #allocation0 [shape = 'u32[]', space=smem, size = 0x4, offset = 0x4, fixed_abs, tag = 'smem constant byte address 0x4 - core index']
  #allocation1 [shape = 'u32[144,128]{1,0:T(1,128)}', space=vmem, size = 0x12000, scoped, tag = 'internal scratch']
  %s0 = inlined_call_operand.vmem [shape: bf16[4,784], index: 0, kind: input, shape index: {}]
  %s1 = inlined_call_operand.vmem [shape: f32[4,8], index: 1, kind: input, shape index: {}]
  %s2 = inlined_call_operand.vmem [shape: bf16[784,512], index: 2, kind: input, shape index: {}]
  %s3 = inlined_call_operand.vmem [shape: f32[1,512], index: 3, kind: input, shape index: {}]
  %s4 = inlined_call_operand.vmem [shape: bf16[512,256], index: 4, kind: input, shape index: {}]
  %s5 = inlined_call_operand.vmem [shape: f32[1,256], index: 5, kind: input, shape index: {}]
  %s6 = inlined_call_operand.vmem [shape: bf16[256,128], index: 6, kind: input, shape index: {}]
  %s7 = inlined_call_operand.vmem [shape: f32[1,128], index: 7, kind: input, shape index: {}]
  %s8 = inlined_call_operand.vmem [shape: bf16[128,128], index: 8, kind: input, shape index: {}]
  %s9 = inlined_call_operand.vmem [shape: f32[1,128], index: 9, kind: input, shape index: {}]
  %s10 = inlined_call_operand.vmem [shape: bf16[128,8], index: 10, kind: input, shape index: {}]
  %s11 = inlined_call_operand.vmem [shape: f32[1,8], index: 11, kind: input, shape index: {}]
  %s12 = inlined_call_operand.hbm [shape: f32[4,8], index: 12, kind: output, shape index: {}]
  %s13 = sld [smem:[#allocation0]]
  $region58: #{encoder_mnist_forward.1} parent=0
    _
  %s15 = ssub.s32 1, %s13
  %s16 = scalar_select 0, %s15, %s13
  $region1: #{encoder_mnist_forward.1} parent=0
    #allocation2 [shape = 'u8[2048]{0}', space=vmem, size = 0x800, scoped, tag = 'output window, operand 0, single buffered']
    #allocation3 [shape = 's32[1]{0}', space=sflag, size = 0x4, scoped, tag = 'scoped memory for encoder_mnist_forward.1']
    %17 = vsyncpa [#allocation3], 0
    // Predicated region
    $region2: #{encoder_mnist_forward.1} parent=1 // pred_check
      _
    $region3: #{encoder_mnist_forward.1} parent=1 // pred_check_branch
      %19 = sbr.rel (0) target = $region5
    $region4: #{encoder_mnist_forward.1} parent=1 // pred_region
      _
    $region5: #{encoder_mnist_forward.1} parent=1 // pred_fallthru
      _
    // Predicated region
    $region6: #{encoder_mnist_forward.1} parent=1 // pred_check
      _
    $region7: #{encoder_mnist_forward.1} parent=1 // pred_check_branch
      %21 = sbr.rel (0) target = $region9
    $region8: #{encoder_mnist_forward.1} parent=1 // pred_region
      _
    $region9: #{encoder_mnist_forward.1} parent=1 // pred_fallthru
      _
    // Predicated region
    $region10: #{encoder_mnist_forward.1} parent=1 // pred_check
      _
    $region11: #{encoder_mnist_forward.1} parent=1 // pred_check_branch
      %23 = sbr.rel (0) target = $region13
    $region12: #{encoder_mnist_forward.1} parent=1 // pred_region
      _
    $region13: #{encoder_mnist_forward.1} parent=1 // pred_fallthru
      _
    // Predicated region
    $region14: #{encoder_mnist_forward.1} parent=1 // pred_check
      _
    $region15: #{encoder_mnist_forward.1} parent=1 // pred_check_branch
      %25 = sbr.rel (0) target = $region17
    $region16: #{encoder_mnist_forward.1} parent=1 // pred_region
      _
    $region17: #{encoder_mnist_forward.1} parent=1 // pred_fallthru
      _
    // Predicated region
    $region18: #{encoder_mnist_forward.1} parent=1 // pred_check
      _
    $region19: #{encoder_mnist_forward.1} parent=1 // pred_check_branch
      %27 = sbr.rel (0) target = $region21
    $region20: #{encoder_mnist_forward.1} parent=1 // pred_region
      _
    $region21: #{encoder_mnist_forward.1} parent=1 // pred_fallthru
      _
    // Predicated region
    $region22: #{encoder_mnist_forward.1} parent=1 // pred_check
      _
    $region23: #{encoder_mnist_forward.1} parent=1 // pred_check_branch
      %29 = sbr.rel (0) target = $region25
    $region24: #{encoder_mnist_forward.1} parent=1 // pred_region
      _
    $region25: #{encoder_mnist_forward.1} parent=1 // pred_fallthru
      _
    // Predicated region
    $region26: #{encoder_mnist_forward.1} parent=1 // pred_check
      _
    $region27: #{encoder_mnist_forward.1} parent=1 // pred_check_branch
      %31 = sbr.rel (0) target = $region29
    $region28: #{encoder_mnist_forward.1} parent=1 // pred_region
      _
    $region29: #{encoder_mnist_forward.1} parent=1 // pred_fallthru
      _
    // Predicated region
    $region30: #{encoder_mnist_forward.1} parent=1 // pred_check
      _
    $region31: #{encoder_mnist_forward.1} parent=1 // pred_check_branch
      %33 = sbr.rel (0) target = $region33
    $region32: #{encoder_mnist_forward.1} parent=1 // pred_region
      _
    $region33: #{encoder_mnist_forward.1} parent=1 // pred_fallthru
      _
    // Predicated region
    $region34: #{encoder_mnist_forward.1} parent=1 // pred_check
      _
    $region35: #{encoder_mnist_forward.1} parent=1 // pred_check_branch
      %35 = sbr.rel (0) target = $region37
    $region36: #{encoder_mnist_forward.1} parent=1 // pred_region
      _
    $region37: #{encoder_mnist_forward.1} parent=1 // pred_fallthru
      _
    // Predicated region
    $region38: #{encoder_mnist_forward.1} parent=1 // pred_check
      _
    $region39: #{encoder_mnist_forward.1} parent=1 // pred_check_branch
      %37 = sbr.rel (0) target = $region41
    $region40: #{encoder_mnist_forward.1} parent=1 // pred_region
      _
    $region41: #{encoder_mnist_forward.1} parent=1 // pred_fallthru
      _
    // Predicated region
    $region42: #{encoder_mnist_forward.1} parent=1 // pred_check
      _
    $region43: #{encoder_mnist_forward.1} parent=1 // pred_check_branch
      %39 = sbr.rel (0) target = $region45
    $region44: #{encoder_mnist_forward.1} parent=1 // pred_region
      _
    $region45: #{encoder_mnist_forward.1} parent=1 // pred_fallthru
      _
    // Predicated region
    $region46: #{encoder_mnist_forward.1} parent=1 // pred_check
      _
    $region47: #{encoder_mnist_forward.1} parent=1 // pred_check_branch
      %41 = sbr.rel (0) target = $region49
    $region48: #{encoder_mnist_forward.1} parent=1 // pred_region
      _
    $region49: #{encoder_mnist_forward.1} parent=1 // pred_fallthru
      _
    %v43 = vld [vmem:[%s0] sm:$0xff]
    %v44 = vld [vmem:[%s0 + $0x8] sm:$0x3f]
    %v45 = vld [vmem:[%s2] sm:$0xff]
    %v46 = vld [vmem:[%s2 + $0x8] sm:$0xff]
    %v47 = vld [vmem:[%s2 + $0x10] sm:$0xff]
    %v48 = vld [vmem:[%s2 + $0x18] sm:$0xff]
    %v49 = vld [vmem:[%s2 + $0x20] sm:$0xff]
    %v50 = vld [vmem:[%s2 + $0x28] sm:$0xff]
    %v51 = vld [vmem:[%s2 + $0x30] sm:$0xff]
    %v52 = vld [vmem:[%s2 + $0x38] sm:$0xff]
    %v53 = vld [vmem:[%s2 + $0x40] sm:$0xff]
    %v54 = vld [vmem:[%s2 + $0x48] sm:$0xff]
    %v55 = vld [vmem:[%s2 + $0x50] sm:$0xff]
    %v56 = vld [vmem:[%s2 + $0x58] sm:$0xff]
    %v57 = vld [vmem:[%s2 + $0x60] sm:$0xff]
    %v58 = vld [vmem:[%s2 + $0x68] sm:$0xff]
    %v59 = vld [vmem:[%s2 + $0x70] sm:$0xff]
    %v60 = vld [vmem:[%s2 + $0x78] sm:$0xff]
    %v61 = vld [vmem:[%s2 + $0x80] sm:$0xff]
    %v62 = vld [vmem:[%s2 + $0x88] sm:$0xff]
    %v63 = vld [vmem:[%s2 + $0x90] sm:$0xff]
    %v64 = vld [vmem:[%s2 + $0x98] sm:$0xff]
    %v65 = vld [vmem:[%s2 + $0xa0] sm:$0xff]
    %v66 = vld [vmem:[%s2 + $0xa8] sm:$0xff]
    %v67 = vld [vmem:[%s2 + $0xb0] sm:$0xff]
    %v68 = vld [vmem:[%s2 + $0xb8] sm:$0xff]
    %v69 = vld [vmem:[%s2 + $0xc0] sm:$0xff]
    %v70 = vld [vmem:[%s2 + $0xc8] sm:$0xff]
    %v71 = vld [vmem:[%s2 + $0xd0] sm:$0xff]
    %v72 = vld [vmem:[%s2 + $0xd8] sm:$0xff]
    %v73 = vld [vmem:[%s2 + $0xe0] sm:$0xff]
    %v74 = vld [vmem:[%s2 + $0xe8] sm:$0xff]
    %v75 = vld [vmem:[%s2 + $0xf0] sm:$0xff]
    %v76 = vld [vmem:[%s2 + $0xf8] sm:$0xff]
    %v77 = vld [vmem:[%s2 + $0x100] sm:$0xff]
    %v78 = vld [vmem:[%s2 + $0x108] sm:$0xff]
    %v79 = vld [vmem:[%s2 + $0x110] sm:$0xff]
    %v80 = vld [vmem:[%s2 + $0x118] sm:$0xff]
    %v81 = vld [vmem:[%s2 + $0x120] sm:$0xff]
    %v82 = vld [vmem:[%s2 + $0x128] sm:$0xff]
    %v83 = vld [vmem:[%s2 + $0x130] sm:$0xff]
    %v84 = vld [vmem:[%s2 + $0x138] sm:$0xff]
    %v85 = vld [vmem:[%s2 + $0x140] sm:$0xff]
    %v86 = vld [vmem:[%s2 + $0x148] sm:$0xff]
    %v87 = vld [vmem:[%s2 + $0x150] sm:$0xff]
    %v88 = vld [vmem:[%s2 + $0x158] sm:$0xff]
    %v89 = vld [vmem:[%s2 + $0x160] sm:$0xff]
    %v90 = vld [vmem:[%s2 + $0x168] sm:$0xff]
    %v91 = vld [vmem:[%s2 + $0x170] sm:$0xff]
    %v92 = vld [vmem:[%s2 + $0x178] sm:$0xff]
    %v93 = vld [vmem:[%s2 + $0x180] sm:$0xff]
    %v94 = vld [vmem:[%s2 + $0x188] sm:$0xff]
    %v95 = vld [vmem:[%s2 + $0x190] sm:$0xff]
    %v96 = vld [vmem:[%s2 + $0x198] sm:$0xff]
    %v97 = vld [vmem:[%s2 + $0x1a0] sm:$0xff]
    %v98 = vld [vmem:[%s2 + $0x1a8] sm:$0xff]
    %v99 = vld [vmem:[%s2 + $0x1b0] sm:$0xff]
    %v100 = vld [vmem:[%s2 + $0x1b8] sm:$0xff]
    %v101 = vld [vmem:[%s2 + $0x1c0] sm:$0xff]
    %v102 = vld [vmem:[%s2 + $0x1c8] sm:$0xff]
    %v103 = vld [vmem:[%s2 + $0x1d0] sm:$0xff]
    %v104 = vld [vmem:[%s2 + $0x1d8] sm:$0xff]
    %v105 = vld [vmem:[%s2 + $0x1e0] sm:$0xff]
    %v106 = vld [vmem:[%s2 + $0x1e8] sm:$0xff]
    %v107 = vld [vmem:[%s2 + $0x1f0] sm:$0xff]
    %v108 = vld [vmem:[%s2 + $0x1f8] sm:$0xff]
    %v109 = vld [vmem:[%s2 + $0x200] sm:$0xff]
    %v110 = vld [vmem:[%s2 + $0x208] sm:$0xff]
    %v111 = vld [vmem:[%s2 + $0x210] sm:$0xff]
    %v112 = vld [vmem:[%s2 + $0x218] sm:$0xff]
    %v113 = vld [vmem:[%s2 + $0x220] sm:$0xff]
    %v114 = vld [vmem:[%s2 + $0x228] sm:$0xff]
    %v115 = vld [vmem:[%s2 + $0x230] sm:$0xff]
    %v116 = vld [vmem:[%s2 + $0x238] sm:$0xff]
    %v117 = vld [vmem:[%s2 + $0x240] sm:$0xff]
    %v118 = vld [vmem:[%s2 + $0x248] sm:$0xff]
    %v119 = vld [vmem:[%s2 + $0x250] sm:$0xff]
    %v120 = vld [vmem:[%s2 + $0x258] sm:$0xff]
    %v121 = vld [vmem:[%s2 + $0x260] sm:$0xff]
    %v122 = vld [vmem:[%s2 + $0x268] sm:$0xff]
    %v123 = vld [vmem:[%s2 + $0x270] sm:$0xff]
    %v124 = vld [vmem:[%s2 + $0x278] sm:$0xff]
    %v125 = vld [vmem:[%s2 + $0x280] sm:$0xff]
    %v126 = vld [vmem:[%s2 + $0x288] sm:$0xff]
    %v127 = vld [vmem:[%s2 + $0x290] sm:$0xff]
    %v128 = vld [vmem:[%s2 + $0x298] sm:$0xff]
    %v129 = vld [vmem:[%s2 + $0x2a0] sm:$0xff]
    %v130 = vld [vmem:[%s2 + $0x2a8] sm:$0xff]
    %v131 = vld [vmem:[%s2 + $0x2b0] sm:$0xff]
    %v132 = vld [vmem:[%s2 + $0x2b8] sm:$0xff]
    %v133 = vld [vmem:[%s2 + $0x2c0] sm:$0xff]
    %v134 = vld [vmem:[%s2 + $0x2c8] sm:$0xff]
    %v135 = vld [vmem:[%s2 + $0x2d0] sm:$0xff]
    %v136 = vld [vmem:[%s2 + $0x2d8] sm:$0xff]
    %v137 = vld [vmem:[%s2 + $0x2e0] sm:$0xff]
    %v138 = vld [vmem:[%s2 + $0x2e8] sm:$0xff]
    %v139 = vld [vmem:[%s2 + $0x2f0] sm:$0xff]
    %v140 = vld [vmem:[%s2 + $0x2f8] sm:$0xff]
    %v141 = vld [vmem:[%s2 + $0x300] sm:$0xff]
    %v142 = vld [vmem:[%s2 + $0x308] sm:$0xff]
    %v143 = vld [vmem:[%s2 + $0x310] sm:$0xff]
    %v144 = vld [vmem:[%s2 + $0x318] sm:$0xff]
    %v145 = vld [vmem:[%s2 + $0x320] sm:$0xff]
    %v146 = vld [vmem:[%s2 + $0x328] sm:$0xff]
    %v147 = vld [vmem:[%s2 + $0x330] sm:$0xff]
    %v148 = vld [vmem:[%s2 + $0x338] sm:$0xff]
    %v149 = vld [vmem:[%s2 + $0x340] sm:$0xff]
    %v150 = vld [vmem:[%s2 + $0x348] sm:$0xff]
    %v151 = vld [vmem:[%s2 + $0x350] sm:$0xff]
    %v152 = vld [vmem:[%s2 + $0x358] sm:$0xff]
    %v153 = vld [vmem:[%s2 + $0x360] sm:$0xff]
    %v154 = vld [vmem:[%s2 + $0x368] sm:$0xff]
    %v155 = vld [vmem:[%s2 + $0x370] sm:$0xff]
    %v156 = vld [vmem:[%s2 + $0x378] sm:$0xff]
    %v157 = vld [vmem:[%s2 + $0x380] sm:$0xff]
    %v158 = vld [vmem:[%s2 + $0x388] sm:$0xff]
    %v159 = vld [vmem:[%s2 + $0x390] sm:$0xff]
    %v160 = vld [vmem:[%s2 + $0x398] sm:$0xff]
    %v161 = vld [vmem:[%s2 + $0x3a0] sm:$0xff]
    %v162 = vld [vmem:[%s2 + $0x3a8] sm:$0xff]
    %v163 = vld [vmem:[%s2 + $0x3b0] sm:$0xff]
    %v164 = vld [vmem:[%s2 + $0x3b8] sm:$0xff]
    %v165 = vld [vmem:[%s2 + $0x3c0] sm:$0xff]
    %v166 = vld [vmem:[%s2 + $0x3c8] sm:$0xff]
    %v167 = vld [vmem:[%s2 + $0x3d0] sm:$0xff]
    %v168 = vld [vmem:[%s2 + $0x3d8] sm:$0xff]
    %v169 = vld [vmem:[%s2 + $0x3e0] sm:$0xff]
    %v170 = vld [vmem:[%s2 + $0x3e8] sm:$0xff]
    %v171 = vld [vmem:[%s2 + $0x3f0] sm:$0xff]
    %v172 = vld [vmem:[%s2 + $0x3f8] sm:$0xff]
    %v173 = vld [vmem:[%s2 + $0x400] sm:$0xff]
    %v174 = vld [vmem:[%s2 + $0x408] sm:$0xff]
    %v175 = vld [vmem:[%s2 + $0x410] sm:$0xff]
    %v176 = vld [vmem:[%s2 + $0x418] sm:$0xff]
    %v177 = vld [vmem:[%s2 + $0x420] sm:$0xff]
    %v178 = vld [vmem:[%s2 + $0x428] sm:$0xff]
    %v179 = vld [vmem:[%s2 + $0x430] sm:$0xff]
    %v180 = vld [vmem:[%s2 + $0x438] sm:$0xff]
    %v181 = vld [vmem:[%s2 + $0x440] sm:$0xff]
    %v182 = vld [vmem:[%s2 + $0x448] sm:$0xff]
    %v183 = vld [vmem:[%s2 + $0x450] sm:$0xff]
    %v184 = vld [vmem:[%s2 + $0x458] sm:$0xff]
    %v185 = vld [vmem:[%s2 + $0x460] sm:$0xff]
    %v186 = vld [vmem:[%s2 + $0x468] sm:$0xff]
    %v187 = vld [vmem:[%s2 + $0x470] sm:$0xff]
    %v188 = vld [vmem:[%s2 + $0x478] sm:$0xff]
    %v189 = vld [vmem:[%s2 + $0x480] sm:$0xff]
    %v190 = vld [vmem:[%s2 + $0x488] sm:$0xff]
    %v191 = vld [vmem:[%s2 + $0x490] sm:$0xff]
    %v192 = vld [vmem:[%s2 + $0x498] sm:$0xff]
    %v193 = vld [vmem:[%s2 + $0x4a0] sm:$0xff]
    %v194 = vld [vmem:[%s2 + $0x4a8] sm:$0xff]
    %v195 = vld [vmem:[%s2 + $0x4b0] sm:$0xff]
    %v196 = vld [vmem:[%s2 + $0x4b8] sm:$0xff]
    %v197 = vld [vmem:[%s2 + $0x4c0] sm:$0xff]
    %v198 = vld [vmem:[%s2 + $0x4c8] sm:$0xff]
    %v199 = vld [vmem:[%s2 + $0x4d0] sm:$0xff]
    %v200 = vld [vmem:[%s2 + $0x4d8] sm:$0xff]
    %v201 = vld [vmem:[%s2 + $0x4e0] sm:$0xff]
    %v202 = vld [vmem:[%s2 + $0x4e8] sm:$0xff]
    %v203 = vld [vmem:[%s2 + $0x4f0] sm:$0xff]
    %v204 = vld [vmem:[%s2 + $0x4f8] sm:$0xff]
    %v205 = vld [vmem:[%s2 + $0x500] sm:$0xff]
    %v206 = vld [vmem:[%s2 + $0x508] sm:$0xff]
    %v207 = vld [vmem:[%s2 + $0x510] sm:$0xff]
    %v208 = vld [vmem:[%s2 + $0x518] sm:$0xff]
    %v209 = vld [vmem:[%s2 + $0x520] sm:$0xff]
    %v210 = vld [vmem:[%s2 + $0x528] sm:$0xff]
    %v211 = vld [vmem:[%s2 + $0x530] sm:$0xff]
    %v212 = vld [vmem:[%s2 + $0x538] sm:$0xff]
    %v213 = vld [vmem:[%s2 + $0x540] sm:$0xff]
    %v214 = vld [vmem:[%s2 + $0x548] sm:$0xff]
    %v215 = vld [vmem:[%s2 + $0x550] sm:$0xff]
    %v216 = vld [vmem:[%s2 + $0x558] sm:$0xff]
    %v217 = vld [vmem:[%s2 + $0x560] sm:$0xff]
    %v218 = vld [vmem:[%s2 + $0x568] sm:$0xff]
    %v219 = vld [vmem:[%s2 + $0x570] sm:$0xff]
    %v220 = vld [vmem:[%s2 + $0x578] sm:$0xff]
    %v221 = vld [vmem:[%s2 + $0x580] sm:$0xff]
    %v222 = vld [vmem:[%s2 + $0x588] sm:$0xff]
    %v223 = vld [vmem:[%s2 + $0x590] sm:$0xff]
    %v224 = vld [vmem:[%s2 + $0x598] sm:$0xff]
    %v225 = vld [vmem:[%s2 + $0x5a0] sm:$0xff]
    %v226 = vld [vmem:[%s2 + $0x5a8] sm:$0xff]
    %v227 = vld [vmem:[%s2 + $0x5b0] sm:$0xff]
    %v228 = vld [vmem:[%s2 + $0x5b8] sm:$0xff]
    %v229 = vld [vmem:[%s2 + $0x5c0] sm:$0xff]
    %v230 = vld [vmem:[%s2 + $0x5c8] sm:$0xff]
    %v231 = vld [vmem:[%s2 + $0x5d0] sm:$0xff]
    %v232 = vld [vmem:[%s2 + $0x5d8] sm:$0xff]
    %v233 = vld [vmem:[%s2 + $0x5e0] sm:$0xff]
    %v234 = vld [vmem:[%s2 + $0x5e8] sm:$0xff]
    %v235 = vld [vmem:[%s2 + $0x5f0] sm:$0xff]
    %v236 = vld [vmem:[%s2 + $0x5f8] sm:$0xff]
    %v237 = vld [vmem:[%s2 + $0x600] sm:$0xff]
    %v238 = vld [vmem:[%s2 + $0x608] sm:$0xff]
    %v239 = vld [vmem:[%s2 + $0x610] sm:$0xff]
    %v240 = vld [vmem:[%s2 + $0x618] sm:$0xff]
    %v241 = vld [vmem:[%s3] sm:$0xf]
    %v243 = vlaneseq
    %v244 = vshrl.u32 %v243, 7
    %v245 = vsub.s32 0, %v244
    %v246 = vrot.slane %v241, %v245
    %v247 = vlaneseq
    %v248 = vshrl.u32 %v247, 7
    %v249 = vsub.s32 1, %v248
    %v250 = vrot.slane %v241, %v249
    %v251 = vlaneseq
    %v252 = vshrl.u32 %v251, 7
    %v253 = vsub.s32 2, %v252
    %v254 = vrot.slane %v241, %v253
    %v255 = vlaneseq
    %v256 = vshrl.u32 %v255, 7
    %v257 = vsub.s32 3, %v256
    %v258 = vrot.slane %v241, %v257
    %v265 = vcombine.high %v43, %v43
    %v267 = vunpack.c.l.s4 1983009808
    %v268 = vunpack.c.0.s8 %v267
    %v269 = vlaneseq
    %v270 = vshrl.u32 %v269, 7
    %v271 = vsub.s32 %v268, %v270
    %v272 = vrot.slane %v43, %v271
    %v274 = vunpack.c.l.s4 1983009808
    %v275 = vunpack.c.0.s8 %v274
    %v276 = vlaneseq
    %v277 = vshrl.u32 %v276, 7
    %v278 = vsub.s32 %v275, %v277
    %v279 = vrot.slane %v265, %v278
    %v280 = vcombine.high %v272, %v272
    %v281 = vcombine.high %v279, %v279
    %v282 = vcombine.high %v44, %v44
    %v284 = vunpack.c.l.s4 1983009808
    %v285 = vunpack.c.0.s8 %v284
    %v286 = vlaneseq
    %v287 = vshrl.u32 %v286, 7
    %v288 = vsub.s32 %v285, %v287
    %v289 = vrot.slane %v44, %v288
    %v291 = vunpack.c.l.s4 1983009808
    %v292 = vunpack.c.0.s8 %v291
    %v293 = vlaneseq
    %v294 = vshrl.u32 %v293, 7
    %v295 = vsub.s32 %v292, %v294
    %v296 = vrot.slane %v282, %v295
    %v297 = vcombine.high %v289, %v289
    %v500 = vunpack.c.l.b16 %v45
    %v501 = vunpack.c.h.b16 %v45
    %v502 = vunpack.c.l.b16 %v46
    %v503 = vunpack.c.h.b16 %v46
    %v504 = vunpack.c.l.b16 %v47
    %v505 = vunpack.c.h.b16 %v47
    %v506 = vunpack.c.l.b16 %v48
    %v507 = vunpack.c.h.b16 %v48
    %v508 = vunpack.c.l.b16 %v49
    %v509 = vunpack.c.h.b16 %v49
    %v510 = vunpack.c.l.b16 %v50
    %v511 = vunpack.c.h.b16 %v50
    %v512 = vunpack.c.l.b16 %v51
    %v513 = vunpack.c.h.b16 %v51
    %v514 = vunpack.c.l.b16 %v52
    %v515 = vunpack.c.h.b16 %v52
    %v516 = vunpack.c.l.b16 %v53
    %v517 = vunpack.c.h.b16 %v53
    %v518 = vunpack.c.l.b16 %v54
    %v519 = vunpack.c.h.b16 %v54
    %v520 = vunpack.c.l.b16 %v55
    %v521 = vunpack.c.h.b16 %v55
    %v522 = vunpack.c.l.b16 %v56
    %v523 = vunpack.c.h.b16 %v56
    %v524 = vunpack.c.l.b16 %v57
    %v525 = vunpack.c.h.b16 %v57
    %v526 = vunpack.c.l.b16 %v58
    %v527 = vunpack.c.h.b16 %v58
    %v528 = vunpack.c.l.b16 %v59
    %v529 = vunpack.c.h.b16 %v59
    %v530 = vunpack.c.l.b16 %v60
    %v531 = vunpack.c.h.b16 %v60
    %v532 = vunpack.c.l.b16 %v61
    %v533 = vunpack.c.h.b16 %v61
    %v534 = vunpack.c.l.b16 %v62
    %v535 = vunpack.c.h.b16 %v62
    %v536 = vunpack.c.l.b16 %v63
    %v537 = vunpack.c.h.b16 %v63
    %v538 = vunpack.c.l.b16 %v64
    %v539 = vunpack.c.h.b16 %v64
    %v540 = vunpack.c.l.b16 %v65
    %v541 = vunpack.c.h.b16 %v65
    %v542 = vunpack.c.l.b16 %v66
    %v543 = vunpack.c.h.b16 %v66
    %v544 = vunpack.c.l.b16 %v67
    %v545 = vunpack.c.h.b16 %v67
    %v546 = vunpack.c.l.b16 %v68
    %v547 = vunpack.c.h.b16 %v68
    %v548 = vunpack.c.l.b16 %v69
    %v549 = vunpack.c.h.b16 %v69
    %v550 = vunpack.c.l.b16 %v70
    %v551 = vunpack.c.h.b16 %v70
    %v552 = vunpack.c.l.b16 %v71
    %v553 = vunpack.c.h.b16 %v71
    %v554 = vunpack.c.l.b16 %v72
    %v555 = vunpack.c.h.b16 %v72
    %v556 = vunpack.c.l.b16 %v73
    %v557 = vunpack.c.h.b16 %v73
    %v558 = vunpack.c.l.b16 %v74
    %v559 = vunpack.c.h.b16 %v74
    %v560 = vunpack.c.l.b16 %v75
    %v561 = vunpack.c.h.b16 %v75
    %v562 = vunpack.c.l.b16 %v76
    %v563 = vunpack.c.h.b16 %v76
    %v564 = vunpack.c.l.b16 %v77
    %v565 = vunpack.c.h.b16 %v77
    %v566 = vunpack.c.l.b16 %v78
    %v567 = vunpack.c.h.b16 %v78
    %v568 = vunpack.c.l.b16 %v79
    %v569 = vunpack.c.h.b16 %v79
    %v570 = vunpack.c.l.b16 %v80
    %v571 = vunpack.c.h.b16 %v80
    %v572 = vunpack.c.l.b16 %v81
    %v573 = vunpack.c.h.b16 %v81
    %v574 = vunpack.c.l.b16 %v82
    %v575 = vunpack.c.h.b16 %v82
    %v576 = vunpack.c.l.b16 %v83
    %v577 = vunpack.c.h.b16 %v83
    %v578 = vunpack.c.l.b16 %v84
    %v579 = vunpack.c.h.b16 %v84
    %v580 = vunpack.c.l.b16 %v85
    %v581 = vunpack.c.h.b16 %v85
    %v582 = vunpack.c.l.b16 %v86
    %v583 = vunpack.c.h.b16 %v86
    %v584 = vunpack.c.l.b16 %v87
    %v585 = vunpack.c.h.b16 %v87
    %v586 = vunpack.c.l.b16 %v88
    %v587 = vunpack.c.h.b16 %v88
    %v588 = vunpack.c.l.b16 %v89
    %v589 = vunpack.c.h.b16 %v89
    %v590 = vunpack.c.l.b16 %v90
    %v591 = vunpack.c.h.b16 %v90
    %v592 = vunpack.c.l.b16 %v91
    %v593 = vunpack.c.h.b16 %v91
    %v594 = vunpack.c.l.b16 %v92
    %v595 = vunpack.c.h.b16 %v92
    %v596 = vunpack.c.l.b16 %v93
    %v597 = vunpack.c.h.b16 %v93
    %v598 = vunpack.c.l.b16 %v94
    %v599 = vunpack.c.h.b16 %v94
    %v600 = vunpack.c.l.b16 %v95
    %v601 = vunpack.c.h.b16 %v95
    %v602 = vunpack.c.l.b16 %v96
    %v603 = vunpack.c.h.b16 %v96
    %v604 = vunpack.c.l.b16 %v97
    %v605 = vunpack.c.h.b16 %v97
    %v606 = vunpack.c.l.b16 %v98
    %v607 = vunpack.c.h.b16 %v98
    %v608 = vunpack.c.l.b16 %v99
    %v609 = vunpack.c.h.b16 %v99
    %v610 = vunpack.c.l.b16 %v100
    %v611 = vunpack.c.h.b16 %v100
    %v612 = vunpack.c.l.b16 %v101
    %v613 = vunpack.c.h.b16 %v101
    %v614 = vunpack.c.l.b16 %v102
    %v615 = vunpack.c.h.b16 %v102
    %v616 = vunpack.c.l.b16 %v103
    %v617 = vunpack.c.h.b16 %v103
    %v618 = vunpack.c.l.b16 %v104
    %v619 = vunpack.c.h.b16 %v104
    %v620 = vunpack.c.l.b16 %v105
    %v621 = vunpack.c.h.b16 %v105
    %v622 = vunpack.c.l.b16 %v106
    %v623 = vunpack.c.h.b16 %v106
    %v624 = vunpack.c.l.b16 %v107
    %v625 = vunpack.c.h.b16 %v107
    %v626 = vunpack.c.l.b16 %v108
    %v627 = vunpack.c.h.b16 %v108
    %v628 = vunpack.c.l.b16 %v109
    %v629 = vunpack.c.h.b16 %v109
    %v630 = vunpack.c.l.b16 %v110
    %v631 = vunpack.c.h.b16 %v110
    %v632 = vunpack.c.l.b16 %v111
    %v633 = vunpack.c.h.b16 %v111
    %v634 = vunpack.c.l.b16 %v112
    %v635 = vunpack.c.h.b16 %v112
    %v636 = vunpack.c.l.b16 %v113
    %v637 = vunpack.c.h.b16 %v113
    %v638 = vunpack.c.l.b16 %v114
    %v639 = vunpack.c.h.b16 %v114
    %v640 = vunpack.c.l.b16 %v115
    %v641 = vunpack.c.h.b16 %v115
    %v642 = vunpack.c.l.b16 %v116
    %v643 = vunpack.c.h.b16 %v116
    %v644 = vunpack.c.l.b16 %v117
    %v645 = vunpack.c.h.b16 %v117
    %v646 = vunpack.c.l.b16 %v118
    %v647 = vunpack.c.h.b16 %v118
    %v648 = vunpack.c.l.b16 %v119
    %v649 = vunpack.c.h.b16 %v119
    %v650 = vunpack.c.l.b16 %v120
    %v651 = vunpack.c.h.b16 %v120
    %v652 = vunpack.c.l.b16 %v121
    %v653 = vunpack.c.h.b16 %v121
    %v654 = vunpack.c.l.b16 %v122
    %v655 = vunpack.c.h.b16 %v122
    %v656 = vunpack.c.l.b16 %v123
    %v657 = vunpack.c.h.b16 %v123
    %v658 = vunpack.c.l.b16 %v124
    %v659 = vunpack.c.h.b16 %v124
    %v660 = vunpack.c.l.b16 %v125
    %v661 = vunpack.c.h.b16 %v125
    %v662 = vunpack.c.l.b16 %v126
    %v663 = vunpack.c.h.b16 %v126
    %v664 = vunpack.c.l.b16 %v127
    %v665 = vunpack.c.h.b16 %v127
    %v666 = vunpack.c.l.b16 %v128
    %v667 = vunpack.c.h.b16 %v128
    %v668 = vunpack.c.l.b16 %v129
    %v669 = vunpack.c.h.b16 %v129
    %v670 = vunpack.c.l.b16 %v130
    %v671 = vunpack.c.h.b16 %v130
    %v672 = vunpack.c.l.b16 %v131
    %v673 = vunpack.c.h.b16 %v131
    %v674 = vunpack.c.l.b16 %v132
    %v675 = vunpack.c.h.b16 %v132
    %v676 = vunpack.c.l.b16 %v133
    %v677 = vunpack.c.h.b16 %v133
    %v678 = vunpack.c.l.b16 %v134
    %v679 = vunpack.c.h.b16 %v134
    %v680 = vunpack.c.l.b16 %v135
    %v681 = vunpack.c.h.b16 %v135
    %v682 = vunpack.c.l.b16 %v136
    %v683 = vunpack.c.h.b16 %v136
    %v684 = vunpack.c.l.b16 %v137
    %v685 = vunpack.c.h.b16 %v137
    %v686 = vunpack.c.l.b16 %v138
    %v687 = vunpack.c.h.b16 %v138
    %v688 = vunpack.c.l.b16 %v139
    %v689 = vunpack.c.h.b16 %v139
    %v690 = vunpack.c.l.b16 %v140
    %v691 = vunpack.c.h.b16 %v140
    %v692 = vunpack.c.l.b16 %v141
    %v693 = vunpack.c.h.b16 %v141
    %v694 = vunpack.c.l.b16 %v142
    %v695 = vunpack.c.h.b16 %v142
    %v696 = vunpack.c.l.b16 %v143
    %v697 = vunpack.c.h.b16 %v143
    %v698 = vunpack.c.l.b16 %v144
    %v699 = vunpack.c.h.b16 %v144
    %v700 = vunpack.c.l.b16 %v145
    %v701 = vunpack.c.h.b16 %v145
    %v702 = vunpack.c.l.b16 %v146
    %v703 = vunpack.c.h.b16 %v146
    %v704 = vunpack.c.l.b16 %v147
    %v705 = vunpack.c.h.b16 %v147
    %v706 = vunpack.c.l.b16 %v148
    %v707 = vunpack.c.h.b16 %v148
    %v708 = vunpack.c.l.b16 %v149
    %v709 = vunpack.c.h.b16 %v149
    %v710 = vunpack.c.l.b16 %v150
    %v711 = vunpack.c.h.b16 %v150
    %v712 = vunpack.c.l.b16 %v151
    %v713 = vunpack.c.h.b16 %v151
    %v714 = vunpack.c.l.b16 %v152
    %v715 = vunpack.c.h.b16 %v152
    %v716 = vunpack.c.l.b16 %v153
    %v717 = vunpack.c.h.b16 %v153
    %v718 = vunpack.c.l.b16 %v154
    %v719 = vunpack.c.h.b16 %v154
    %v720 = vunpack.c.l.b16 %v155
    %v721 = vunpack.c.h.b16 %v155
    %v722 = vunpack.c.l.b16 %v156
    %v723 = vunpack.c.h.b16 %v156
    %v724 = vunpack.c.l.b16 %v157
    %v725 = vunpack.c.h.b16 %v157
    %v726 = vunpack.c.l.b16 %v158
    %v727 = vunpack.c.h.b16 %v158
    %v728 = vunpack.c.l.b16 %v159
    %v729 = vunpack.c.h.b16 %v159
    %v730 = vunpack.c.l.b16 %v160
    %v731 = vunpack.c.h.b16 %v160
    %v732 = vunpack.c.l.b16 %v161
    %v733 = vunpack.c.h.b16 %v161
    %v734 = vunpack.c.l.b16 %v162
    %v735 = vunpack.c.h.b16 %v162
    %v736 = vunpack.c.l.b16 %v163
    %v737 = vunpack.c.h.b16 %v163
    %v738 = vunpack.c.l.b16 %v164
    %v739 = vunpack.c.h.b16 %v164
    %v740 = vunpack.c.l.b16 %v165
    %v741 = vunpack.c.h.b16 %v165
    %v742 = vunpack.c.l.b16 %v166
    %v743 = vunpack.c.h.b16 %v166
    %v744 = vunpack.c.l.b16 %v167
    %v745 = vunpack.c.h.b16 %v167
    %v746 = vunpack.c.l.b16 %v168
    %v747 = vunpack.c.h.b16 %v168
    %v748 = vunpack.c.l.b16 %v169
    %v749 = vunpack.c.h.b16 %v169
    %v750 = vunpack.c.l.b16 %v170
    %v751 = vunpack.c.h.b16 %v170
    %v752 = vunpack.c.l.b16 %v171
    %v753 = vunpack.c.h.b16 %v171
    %v754 = vunpack.c.l.b16 %v172
    %v755 = vunpack.c.h.b16 %v172
    %v756 = vunpack.c.l.b16 %v173
    %v757 = vunpack.c.h.b16 %v173
    %v758 = vunpack.c.l.b16 %v174
    %v759 = vunpack.c.h.b16 %v174
    %v760 = vunpack.c.l.b16 %v175
    %v761 = vunpack.c.h.b16 %v175
    %v762 = vunpack.c.l.b16 %v176
    %v763 = vunpack.c.h.b16 %v176
    %v764 = vunpack.c.l.b16 %v177
    %v765 = vunpack.c.h.b16 %v177
    %v766 = vunpack.c.l.b16 %v178
    %v767 = vunpack.c.h.b16 %v178
    %v768 = vunpack.c.l.b16 %v179
    %v769 = vunpack.c.h.b16 %v179
    %v770 = vunpack.c.l.b16 %v180
    %v771 = vunpack.c.h.b16 %v180
    %v772 = vunpack.c.l.b16 %v181
    %v773 = vunpack.c.h.b16 %v181
    %v774 = vunpack.c.l.b16 %v182
    %v775 = vunpack.c.h.b16 %v182
    %v776 = vunpack.c.l.b16 %v183
    %v777 = vunpack.c.h.b16 %v183
    %v778 = vunpack.c.l.b16 %v184
    %v779 = vunpack.c.h.b16 %v184
    %v780 = vunpack.c.l.b16 %v185
    %v781 = vunpack.c.h.b16 %v185
    %v782 = vunpack.c.l.b16 %v186
    %v783 = vunpack.c.h.b16 %v186
    %v784 = vunpack.c.l.b16 %v187
    %v785 = vunpack.c.h.b16 %v187
    %v786 = vunpack.c.l.b16 %v188
    %v787 = vunpack.c.h.b16 %v188
    %v788 = vunpack.c.l.b16 %v189
    %v789 = vunpack.c.h.b16 %v189
    %v790 = vunpack.c.l.b16 %v190
    %v791 = vunpack.c.h.b16 %v190
    %v792 = vunpack.c.l.b16 %v191
    %v793 = vunpack.c.h.b16 %v191
    %v794 = vunpack.c.l.b16 %v192
    %v795 = vunpack.c.h.b16 %v192
    %v796 = vunpack.c.l.b16 %v193
    %v797 = vunpack.c.h.b16 %v193
    %v798 = vunpack.c.l.b16 %v194
    %v799 = vunpack.c.h.b16 %v194
    %v800 = vunpack.c.l.b16 %v195
    %v801 = vunpack.c.h.b16 %v195
    %v802 = vunpack.c.l.b16 %v196
    %v803 = vunpack.c.h.b16 %v196
    %v804 = vunpack.c.l.b16 %v197
    %v805 = vunpack.c.h.b16 %v197
    %v806 = vunpack.c.l.b16 %v198
    %v807 = vunpack.c.h.b16 %v198
    %v808 = vunpack.c.l.b16 %v199
    %v809 = vunpack.c.h.b16 %v199
    %v810 = vunpack.c.l.b16 %v200
    %v811 = vunpack.c.h.b16 %v200
    %v812 = vunpack.c.l.b16 %v201
    %v813 = vunpack.c.h.b16 %v201
    %v814 = vunpack.c.l.b16 %v202
    %v815 = vunpack.c.h.b16 %v202
    %v816 = vunpack.c.l.b16 %v203
    %v817 = vunpack.c.h.b16 %v203
    %v818 = vunpack.c.l.b16 %v204
    %v819 = vunpack.c.h.b16 %v204
    %v820 = vunpack.c.l.b16 %v205
    %v821 = vunpack.c.h.b16 %v205
    %v822 = vunpack.c.l.b16 %v206
    %v823 = vunpack.c.h.b16 %v206
    %v824 = vunpack.c.l.b16 %v207
    %v825 = vunpack.c.h.b16 %v207
    %v826 = vunpack.c.l.b16 %v208
    %v827 = vunpack.c.h.b16 %v208
    %v828 = vunpack.c.l.b16 %v209
    %v829 = vunpack.c.h.b16 %v209
    %v830 = vunpack.c.l.b16 %v210
    %v831 = vunpack.c.h.b16 %v210
    %v832 = vunpack.c.l.b16 %v211
    %v833 = vunpack.c.h.b16 %v211
    %v834 = vunpack.c.l.b16 %v212
    %v835 = vunpack.c.h.b16 %v212
    %v836 = vunpack.c.l.b16 %v213
    %v837 = vunpack.c.h.b16 %v213
    %v838 = vunpack.c.l.b16 %v214
    %v839 = vunpack.c.h.b16 %v214
    %v840 = vunpack.c.l.b16 %v215
    %v841 = vunpack.c.h.b16 %v215
    %v842 = vunpack.c.l.b16 %v216
    %v843 = vunpack.c.h.b16 %v216
    %v844 = vunpack.c.l.b16 %v217
    %v845 = vunpack.c.h.b16 %v217
    %v846 = vunpack.c.l.b16 %v218
    %v847 = vunpack.c.h.b16 %v218
    %v848 = vunpack.c.l.b16 %v219
    %v849 = vunpack.c.h.b16 %v219
    %v850 = vunpack.c.l.b16 %v220
    %v851 = vunpack.c.h.b16 %v220
    %v852 = vunpack.c.l.b16 %v221
    %v853 = vunpack.c.h.b16 %v221
    %v854 = vunpack.c.l.b16 %v222
    %v855 = vunpack.c.h.b16 %v222
    %v856 = vunpack.c.l.b16 %v223
    %v857 = vunpack.c.h.b16 %v223
    %v858 = vunpack.c.l.b16 %v224
    %v859 = vunpack.c.h.b16 %v224
    %v860 = vunpack.c.l.b16 %v225
    %v861 = vunpack.c.h.b16 %v225
    %v862 = vunpack.c.l.b16 %v226
    %v863 = vunpack.c.h.b16 %v226
    %v864 = vunpack.c.l.b16 %v227
    %v865 = vunpack.c.h.b16 %v227
    %v866 = vunpack.c.l.b16 %v228
    %v867 = vunpack.c.h.b16 %v228
    %v868 = vunpack.c.l.b16 %v229
    %v869 = vunpack.c.h.b16 %v229
    %v870 = vunpack.c.l.b16 %v230
    %v871 = vunpack.c.h.b16 %v230
    %v872 = vunpack.c.l.b16 %v231
    %v873 = vunpack.c.h.b16 %v231
    %v874 = vunpack.c.l.b16 %v232
    %v875 = vunpack.c.h.b16 %v232
    %v876 = vunpack.c.l.b16 %v233
    %v877 = vunpack.c.h.b16 %v233
    %v878 = vunpack.c.l.b16 %v234
    %v879 = vunpack.c.h.b16 %v234
    %v880 = vunpack.c.l.b16 %v235
    %v881 = vunpack.c.h.b16 %v235
    %v882 = vunpack.c.l.b16 %v236
    %v883 = vunpack.c.h.b16 %v236
    %v884 = vunpack.c.l.b16 %v237
    %v885 = vunpack.c.h.b16 %v237
    %v886 = vunpack.c.l.b16 %v238
    %v887 = vunpack.c.h.b16 %v238
    %v888 = vunpack.c.l.b16 %v239
    %v889 = vunpack.c.h.b16 %v239
    %v890 = vunpack.c.l.b16 %v240
    %v891 = vunpack.c.h.b16 %v240
    %v892 = vpack.c.b16 %v504, %v500
    %v893 = vpack.c.b16 %v505, %v501
    %v894 = vpack.c.b16 %v506, %v502
    %v895 = vpack.c.b16 %v507, %v503
    %v896 = vpack.c.b16 %v512, %v508
    %v897 = vpack.c.b16 %v513, %v509
    %v898 = vpack.c.b16 %v514, %v510
    %v899 = vpack.c.b16 %v515, %v511
    %v900 = vpack.c.b16 %v520, %v516
    %v901 = vpack.c.b16 %v521, %v517
    %v902 = vpack.c.b16 %v522, %v518
    %v903 = vpack.c.b16 %v523, %v519
    %v904 = vpack.c.b16 %v528, %v524
    %v905 = vpack.c.b16 %v529, %v525
    %v906 = vpack.c.b16 %v530, %v526
    %v907 = vpack.c.b16 %v531, %v527
    %v908 = vpack.c.b16 %v536, %v532
    %v909 = vpack.c.b16 %v537, %v533
    %v910 = vpack.c.b16 %v538, %v534
    %v911 = vpack.c.b16 %v539, %v535
    %v912 = vpack.c.b16 %v544, %v540
    %v913 = vpack.c.b16 %v545, %v541
    %v914 = vpack.c.b16 %v546, %v542
    %v915 = vpack.c.b16 %v547, %v543
    %v916 = vpack.c.b16 %v552, %v548
    %v917 = vpack.c.b16 %v553, %v549
    %v918 = vpack.c.b16 %v554, %v550
    %v919 = vpack.c.b16 %v555, %v551
    %v920 = vpack.c.b16 %v560, %v556
    %v921 = vpack.c.b16 %v561, %v557
    %v922 = vpack.c.b16 %v562, %v558
    %v923 = vpack.c.b16 %v563, %v559
    %v924 = vpack.c.b16 %v568, %v564
    %v925 = vpack.c.b16 %v569, %v565
    %v926 = vpack.c.b16 %v570, %v566
    %v927 = vpack.c.b16 %v571, %v567
    %v928 = vpack.c.b16 %v576, %v572
    %v929 = vpack.c.b16 %v577, %v573
    %v930 = vpack.c.b16 %v578, %v574
    %v931 = vpack.c.b16 %v579, %v575
    %v932 = vpack.c.b16 %v584, %v580
    %v933 = vpack.c.b16 %v585, %v581
    %v934 = vpack.c.b16 %v586, %v582
    %v935 = vpack.c.b16 %v587, %v583
    %v936 = vpack.c.b16 %v592, %v588
    %v937 = vpack.c.b16 %v593, %v589
    %v938 = vpack.c.b16 %v594, %v590
    %v939 = vpack.c.b16 %v595, %v591
    %v940 = vpack.c.b16 %v600, %v596
    %v941 = vpack.c.b16 %v601, %v597
    %v942 = vpack.c.b16 %v602, %v598
    %v943 = vpack.c.b16 %v603, %v599
    %v944 = vpack.c.b16 %v608, %v604
    %v945 = vpack.c.b16 %v609, %v605
    %v946 = vpack.c.b16 %v610, %v606
    %v947 = vpack.c.b16 %v611, %v607
    %v948 = vpack.c.b16 %v616, %v612
    %v949 = vpack.c.b16 %v617, %v613
    %v950 = vpack.c.b16 %v618, %v614
    %v951 = vpack.c.b16 %v619, %v615
    %v952 = vpack.c.b16 %v624, %v620
    %v953 = vpack.c.b16 %v625, %v621
    %v954 = vpack.c.b16 %v626, %v622
    %v955 = vpack.c.b16 %v627, %v623
    %v956 = vpack.c.b16 %v632, %v628
    %v957 = vpack.c.b16 %v633, %v629
    %v958 = vpack.c.b16 %v634, %v630
    %v959 = vpack.c.b16 %v635, %v631
    %v960 = vpack.c.b16 %v640, %v636
    %v961 = vpack.c.b16 %v641, %v637
    %v962 = vpack.c.b16 %v642, %v638
    %v963 = vpack.c.b16 %v643, %v639
    %v964 = vpack.c.b16 %v648, %v644
    %v965 = vpack.c.b16 %v649, %v645
    %v966 = vpack.c.b16 %v650, %v646
    %v967 = vpack.c.b16 %v651, %v647
    %v968 = vpack.c.b16 %v656, %v652
    %v969 = vpack.c.b16 %v657, %v653
    %v970 = vpack.c.b16 %v658, %v654
    %v971 = vpack.c.b16 %v659, %v655
    %v972 = vpack.c.b16 %v664, %v660
    %v973 = vpack.c.b16 %v665, %v661
    %v974 = vpack.c.b16 %v666, %v662
    %v975 = vpack.c.b16 %v667, %v663
    %v976 = vpack.c.b16 %v672, %v668
    %v977 = vpack.c.b16 %v673, %v669
    %v978 = vpack.c.b16 %v674, %v670
    %v979 = vpack.c.b16 %v675, %v671
    %v980 = vpack.c.b16 %v680, %v676
    %v981 = vpack.c.b16 %v681, %v677
    %v982 = vpack.c.b16 %v682, %v678
    %v983 = vpack.c.b16 %v683, %v679
    %v984 = vpack.c.b16 %v688, %v684
    %v985 = vpack.c.b16 %v689, %v685
    %v986 = vpack.c.b16 %v690, %v686
    %v987 = vpack.c.b16 %v691, %v687
    %v988 = vpack.c.b16 %v696, %v692
    %v989 = vpack.c.b16 %v697, %v693
    %v990 = vpack.c.b16 %v698, %v694
    %v991 = vpack.c.b16 %v699, %v695
    %v992 = vpack.c.b16 %v704, %v700
    %v993 = vpack.c.b16 %v705, %v701
    %v994 = vpack.c.b16 %v706, %v702
    %v995 = vpack.c.b16 %v707, %v703
    %v996 = vpack.c.b16 %v712, %v708
    %v997 = vpack.c.b16 %v713, %v709
    %v998 = vpack.c.b16 %v714, %v710
    %v999 = vpack.c.b16 %v715, %v711
    %v1000 = vpack.c.b16 %v720, %v716
    %v1001 = vpack.c.b16 %v721, %v717
    %v1002 = vpack.c.b16 %v722, %v718
    %v1003 = vpack.c.b16 %v723, %v719
    %v1004 = vpack.c.b16 %v728, %v724
    %v1005 = vpack.c.b16 %v729, %v725
    %v1006 = vpack.c.b16 %v730, %v726
    %v1007 = vpack.c.b16 %v731, %v727
    %v1008 = vpack.c.b16 %v736, %v732
    %v1009 = vpack.c.b16 %v737, %v733
    %v1010 = vpack.c.b16 %v738, %v734
    %v1011 = vpack.c.b16 %v739, %v735
    %v1012 = vpack.c.b16 %v744, %v740
    %v1013 = vpack.c.b16 %v745, %v741
    %v1014 = vpack.c.b16 %v746, %v742
    %v1015 = vpack.c.b16 %v747, %v743
    %v1016 = vpack.c.b16 %v752, %v748
    %v1017 = vpack.c.b16 %v753, %v749
    %v1018 = vpack.c.b16 %v754, %v750
    %v1019 = vpack.c.b16 %v755, %v751
    %v1020 = vpack.c.b16 %v760, %v756
    %v1021 = vpack.c.b16 %v761, %v757
    %v1022 = vpack.c.b16 %v762, %v758
    %v1023 = vpack.c.b16 %v763, %v759
    %v1024 = vpack.c.b16 %v768, %v764
    %v1025 = vpack.c.b16 %v769, %v765
    %v1026 = vpack.c.b16 %v770, %v766
    %v1027 = vpack.c.b16 %v771, %v767
    %v1028 = vpack.c.b16 %v776, %v772
    %v1029 = vpack.c.b16 %v777, %v773
    %v1030 = vpack.c.b16 %v778, %v774
    %v1031 = vpack.c.b16 %v779, %v775
    %v1032 = vpack.c.b16 %v784, %v780
    %v1033 = vpack.c.b16 %v785, %v781
    %v1034 = vpack.c.b16 %v786, %v782
    %v1035 = vpack.c.b16 %v787, %v783
    %v1036 = vpack.c.b16 %v792, %v788
    %v1037 = vpack.c.b16 %v793, %v789
    %v1038 = vpack.c.b16 %v794, %v790
    %v1039 = vpack.c.b16 %v795, %v791
    %v1040 = vpack.c.b16 %v800, %v796
    %v1041 = vpack.c.b16 %v801, %v797
    %v1042 = vpack.c.b16 %v802, %v798
    %v1043 = vpack.c.b16 %v803, %v799
    %v1044 = vpack.c.b16 %v808, %v804
    %v1045 = vpack.c.b16 %v809, %v805
    %v1046 = vpack.c.b16 %v810, %v806
    %v1047 = vpack.c.b16 %v811, %v807
    %v1048 = vpack.c.b16 %v816, %v812
    %v1049 = vpack.c.b16 %v817, %v813
    %v1050 = vpack.c.b16 %v818, %v814
    %v1051 = vpack.c.b16 %v819, %v815
    %v1052 = vpack.c.b16 %v824, %v820
    %v1053 = vpack.c.b16 %v825, %v821
    %v1054 = vpack.c.b16 %v826, %v822
    %v1055 = vpack.c.b16 %v827, %v823
    %v1056 = vpack.c.b16 %v832, %v828
    %v1057 = vpack.c.b16 %v833, %v829
    %v1058 = vpack.c.b16 %v834, %v830
    %v1059 = vpack.c.b16 %v835, %v831
    %v1060 = vpack.c.b16 %v840, %v836
    %v1061 = vpack.c.b16 %v841, %v837
    %v1062 = vpack.c.b16 %v842, %v838
    %v1063 = vpack.c.b16 %v843, %v839
    %v1064 = vpack.c.b16 %v848, %v844
    %v1065 = vpack.c.b16 %v849, %v845
    %v1066 = vpack.c.b16 %v850, %v846
    %v1067 = vpack.c.b16 %v851, %v847
    %v1068 = vpack.c.b16 %v856, %v852
    %v1069 = vpack.c.b16 %v857, %v853
    %v1070 = vpack.c.b16 %v858, %v854
    %v1071 = vpack.c.b16 %v859, %v855
    %v1072 = vpack.c.b16 %v864, %v860
    %v1073 = vpack.c.b16 %v865, %v861
    %v1074 = vpack.c.b16 %v866, %v862
    %v1075 = vpack.c.b16 %v867, %v863
    %v1076 = vpack.c.b16 %v872, %v868
    %v1077 = vpack.c.b16 %v873, %v869
    %v1078 = vpack.c.b16 %v874, %v870
    %v1079 = vpack.c.b16 %v875, %v871
    %v1080 = vpack.c.b16 %v880, %v876
    %v1081 = vpack.c.b16 %v881, %v877
    %v1082 = vpack.c.b16 %v882, %v878
    %v1083 = vpack.c.b16 %v883, %v879
    %v1084 = vpack.c.b16 %v888, %v884
    %v1085 = vpack.c.b16 %v889, %v885
    %v1086 = vpack.c.b16 %v890, %v886
    %v1087 = vpack.c.b16 %v891, %v887
    %vm1284 = vcmask 130048
    %v1286 = vsel %vm1284, %v296, 0
    %1288 = vmatprep.subr.bf16.mxu0 %v921
    %1289 = vmatpush1.bf16.msra.mxu0 %v920
    %1290 = vmatprep.subr.bf16.mxu0 %v917
    %1291 = vmatpush1.bf16.msra.mxu0 %v916
    %1292 = vmatprep.subr.bf16.mxu0 %v913
    %1293 = vmatpush1.bf16.msra.mxu0 %v912
    %1294 = vmatprep.subr.bf16.mxu0 %v909
    %1295 = vmatpush1.bf16.msra.mxu0 %v908
    %1296 = vmatprep.subr.bf16.mxu0 %v905
    %1297 = vmatpush1.bf16.msra.mxu0 %v904
    %1298 = vmatprep.subr.bf16.mxu0 %v901
    %1299 = vmatpush1.bf16.msra.mxu0 %v900
    %1300 = vmatprep.subr.bf16.mxu0 %v897
    %1301 = vmatpush1.bf16.msra.mxu0 %v896
    %1302 = vmatprep.subr.bf16.mxu0 %v893
    %1303 = vmatpush1.bf16.msra.mxu0 %v892
    %1304 = vmatprep.subr.bf16.mxu0 %v953
    %1305 = vmatpush2.bf16.msra.mxu0 %v952
    %1306 = vmatprep.subr.bf16.mxu0 %v949
    %1307 = vmatpush2.bf16.msra.mxu0 %v948
    %1308 = vmatprep.subr.bf16.mxu0 %v945
    %1309 = vmatpush2.bf16.msra.mxu0 %v944
    %1310 = vmatprep.subr.bf16.mxu0 %v941
    %1311 = vmatpush2.bf16.msra.mxu0 %v940
    %1312 = vmatprep.subr.bf16.mxu0 %v937
    %1313 = vmatpush2.bf16.msra.mxu0 %v936
    %1314 = vmatprep.subr.bf16.mxu0 %v933
    %1315 = vmatpush2.bf16.msra.mxu0 %v932
    %1316 = vmatprep.subr.bf16.mxu0 %v929
    %1317 = vmatpush2.bf16.msra.mxu0 %v928
    %1318 = vmatprep.subr.bf16.mxu0 %v925
    %1319 = vmatpush2.bf16.msra.mxu0 %v924
    %1320 = vmatprep.mubr.bf16.mxu0 %v280
    %1321 = vmatmul.mubr.bf16.gmra.mxu0 %v272
    %v1322 = vpop.f32.mrf.mxu0
    %v1323 = vadd.f32 %v246, %v1322
    %v1324 = vpop.f32.mrf.mxu0
    %v1325 = vadd.f32 %v250, %v1324
    %v1326 = vpop.f32.mrf.mxu0
    %v1327 = vpop.f32.mrf.mxu0
    %1328 = vdwg.mxu0
    %1329 = vmatprep.subr.bf16.mxu0 %v985
    %1330 = vmatpush1.bf16.msra.mxu0 %v984
    %1331 = vmatprep.subr.bf16.mxu0 %v981
    %1332 = vmatpush1.bf16.msra.mxu0 %v980
    %1333 = vmatprep.subr.bf16.mxu0 %v977
    %1334 = vmatpush1.bf16.msra.mxu0 %v976
    %1335 = vmatprep.subr.bf16.mxu0 %v973
    %1336 = vmatpush1.bf16.msra.mxu0 %v972
    %1337 = vmatprep.subr.bf16.mxu0 %v969
    %1338 = vmatpush1.bf16.msra.mxu0 %v968
    %1339 = vmatprep.subr.bf16.mxu0 %v965
    %1340 = vmatpush1.bf16.msra.mxu0 %v964
    %1341 = vmatprep.subr.bf16.mxu0 %v961
    %1342 = vmatpush1.bf16.msra.mxu0 %v960
    %1343 = vmatprep.subr.bf16.mxu0 %v957
    %1344 = vmatpush1.bf16.msra.mxu0 %v956
    %1345 = vmatprep.subr.bf16.mxu0 %v1017
    %1346 = vmatpush2.bf16.msra.mxu0 %v1016
    %1347 = vmatprep.subr.bf16.mxu0 %v1013
    %1348 = vmatpush2.bf16.msra.mxu0 %v1012
    %1349 = vmatprep.subr.bf16.mxu0 %v1009
    %1350 = vmatpush2.bf16.msra.mxu0 %v1008
    %1351 = vmatprep.subr.bf16.mxu0 %v1005
    %1352 = vmatpush2.bf16.msra.mxu0 %v1004
    %1353 = vmatprep.subr.bf16.mxu0 %v1001
    %1354 = vmatpush2.bf16.msra.mxu0 %v1000
    %1355 = vmatprep.subr.bf16.mxu0 %v997
    %1356 = vmatpush2.bf16.msra.mxu0 %v996
    %1357 = vmatprep.subr.bf16.mxu0 %v993
    %1358 = vmatpush2.bf16.msra.mxu0 %v992
    %1359 = vmatprep.subr.bf16.mxu0 %v989
    %1360 = vmatpush2.bf16.msra.mxu0 %v988
    %1361 = vmatprep.mubr.bf16.mxu0 %v281
    %1362 = vmatmul.mubr.bf16.gmra.mxu0 %v279
    %v1363 = vpop.f32.mrf.mxu0
    %v1364 = vadd.f32 %v1323, %v1363
    %v1365 = vpop.f32.mrf.mxu0
    %v1366 = vadd.f32 %v1325, %v1365
    %v1367 = vpop.f32.mrf.mxu0
    %v1368 = vpop.f32.mrf.mxu0
    %1369 = vdwg.mxu0
    %1370 = vmatprep.subr.bf16.mxu0 %v1049
    %1371 = vmatpush1.bf16.msra.mxu0 %v1048
    %1372 = vmatprep.subr.bf16.mxu0 %v1045
    %1373 = vmatpush1.bf16.msra.mxu0 %v1044
    %1374 = vmatprep.subr.bf16.mxu0 %v1041
    %1375 = vmatpush1.bf16.msra.mxu0 %v1040
    %1376 = vmatprep.subr.bf16.mxu0 %v1037
    %1377 = vmatpush1.bf16.msra.mxu0 %v1036
    %1378 = vmatprep.subr.bf16.mxu0 %v1033
    %1379 = vmatpush1.bf16.msra.mxu0 %v1032
    %1380 = vmatprep.subr.bf16.mxu0 %v1029
    %1381 = vmatpush1.bf16.msra.mxu0 %v1028
    %1382 = vmatprep.subr.bf16.mxu0 %v1025
    %1383 = vmatpush1.bf16.msra.mxu0 %v1024
    %1384 = vmatprep.subr.bf16.mxu0 %v1021
    %1385 = vmatpush1.bf16.msra.mxu0 %v1020
    %1386 = vmatprep.subr.bf16.mxu0 %v1081
    %1387 = vmatpush2.bf16.msra.mxu0 %v1080
    %1388 = vmatprep.subr.bf16.mxu0 %v1077
    %1389 = vmatpush2.bf16.msra.mxu0 %v1076
    %1390 = vmatprep.subr.bf16.mxu0 %v1073
    %1391 = vmatpush2.bf16.msra.mxu0 %v1072
    %1392 = vmatprep.subr.bf16.mxu0 %v1069
    %1393 = vmatpush2.bf16.msra.mxu0 %v1068
    %1394 = vmatprep.subr.bf16.mxu0 %v1065
    %1395 = vmatpush2.bf16.msra.mxu0 %v1064
    %1396 = vmatprep.subr.bf16.mxu0 %v1061
    %1397 = vmatpush2.bf16.msra.mxu0 %v1060
    %1398 = vmatprep.subr.bf16.mxu0 %v1057
    %1399 = vmatpush2.bf16.msra.mxu0 %v1056
    %1400 = vmatprep.subr.bf16.mxu0 %v1053
    %1401 = vmatpush2.bf16.msra.mxu0 %v1052
    %1402 = vmatprep.mubr.bf16.mxu0 %v297
    %1403 = vmatmul.mubr.bf16.gmra.mxu0 %v289
    %v1404 = vpop.f32.mrf.mxu0
    %v1405 = vadd.f32 %v1364, %v1404
    %v1406 = vpop.f32.mrf.mxu0
    %v1407 = vadd.f32 %v1366, %v1406
    %v1408 = vpop.f32.mrf.mxu0
    %v1409 = vpop.f32.mrf.mxu0
    %1410 = vdwg.mxu0
    %1411 = vmatprep.subr.bf16.mxu0 0
    %1412 = vmatpush1.bf16.msra.mxu0 0
    %1413 = vmatprep.subr.bf16.mxu0 0
    %1414 = vmatpush1.bf16.msra.mxu0 0
    %1415 = vmatprep.subr.bf16.mxu0 0
    %1416 = vmatpush1.bf16.msra.mxu0 0
    %1417 = vmatprep.subr.bf16.mxu0 0
    %1418 = vmatpush1.bf16.msra.mxu0 0
    %1419 = vmatprep.subr.bf16.mxu0 0
    %1420 = vmatpush1.bf16.msra.mxu0 0
    %1421 = vmatprep.subr.bf16.mxu0 0
    %1422 = vmatpush1.bf16.msra.mxu0 0
    %1423 = vmatprep.subr.bf16.mxu0 0
    %1424 = vmatpush1.bf16.msra.mxu0 0
    %1425 = vmatprep.subr.bf16.mxu0 %v1085
    %1426 = vmatpush1.bf16.msra.mxu0 %v1084
    %1427 = vmatprep.subr.bf16.mxu0 0
    %1428 = vmatpush2.bf16.msra.mxu0 0
    %1429 = vmatprep.subr.bf16.mxu0 0
    %1430 = vmatpush2.bf16.msra.mxu0 0
    %1431 = vmatprep.subr.bf16.mxu0 0
    %1432 = vmatpush2.bf16.msra.mxu0 0
    %1433 = vmatprep.subr.bf16.mxu0 0
    %1434 = vmatpush2.bf16.msra.mxu0 0
    %1435 = vmatprep.subr.bf16.mxu0 0
    %1436 = vmatpush2.bf16.msra.mxu0 0
    %1437 = vmatprep.subr.bf16.mxu0 0
    %1438 = vmatpush2.bf16.msra.mxu0 0
    %1439 = vmatprep.subr.bf16.mxu0 0
    %1440 = vmatpush2.bf16.msra.mxu0 0
    %1441 = vmatprep.subr.bf16.mxu0 0
    %1442 = vmatpush2.bf16.msra.mxu0 0
    %1443 = vmatprep.mubr.bf16.mxu0 0
    %1444 = vmatmul.mubr.bf16.gmra.mxu0 %v1286
    %v1445 = vpop.f32.mrf.mxu0
    %v1446 = vadd.f32 %v1405, %v1445
    %v1447 = vpop.f32.mrf.mxu0
    %v1448 = vadd.f32 %v1407, %v1447
    %v1449 = vpop.f32.mrf.mxu0
    %v1450 = vpop.f32.mrf.mxu0
    %1451 = vdwg.mxu0
    %1452 = vmatprep.subr.bf16.mxu0 %v923
    %1453 = vmatpush1.bf16.msra.mxu0 %v922
    %1454 = vmatprep.subr.bf16.mxu0 %v919
    %1455 = vmatpush1.bf16.msra.mxu0 %v918
    %1456 = vmatprep.subr.bf16.mxu0 %v915
    %1457 = vmatpush1.bf16.msra.mxu0 %v914
    %1458 = vmatprep.subr.bf16.mxu0 %v911
    %1459 = vmatpush1.bf16.msra.mxu0 %v910
    %1460 = vmatprep.subr.bf16.mxu0 %v907
    %1461 = vmatpush1.bf16.msra.mxu0 %v906
    %1462 = vmatprep.subr.bf16.mxu0 %v903
    %1463 = vmatpush1.bf16.msra.mxu0 %v902
    %1464 = vmatprep.subr.bf16.mxu0 %v899
    %1465 = vmatpush1.bf16.msra.mxu0 %v898
    %1466 = vmatprep.subr.bf16.mxu0 %v895
    %1467 = vmatpush1.bf16.msra.mxu0 %v894
    %1468 = vmatprep.subr.bf16.mxu0 %v955
    %1469 = vmatpush2.bf16.msra.mxu0 %v954
    %1470 = vmatprep.subr.bf16.mxu0 %v951
    %1471 = vmatpush2.bf16.msra.mxu0 %v950
    %1472 = vmatprep.subr.bf16.mxu0 %v947
    %1473 = vmatpush2.bf16.msra.mxu0 %v946
    %1474 = vmatprep.subr.bf16.mxu0 %v943
    %1475 = vmatpush2.bf16.msra.mxu0 %v942
    %1476 = vmatprep.subr.bf16.mxu0 %v939
    %1477 = vmatpush2.bf16.msra.mxu0 %v938
    %1478 = vmatprep.subr.bf16.mxu0 %v935
    %1479 = vmatpush2.bf16.msra.mxu0 %v934
    %1480 = vmatprep.subr.bf16.mxu0 %v931
    %1481 = vmatpush2.bf16.msra.mxu0 %v930
    %1482 = vmatprep.subr.bf16.mxu0 %v927
    %1483 = vmatpush2.bf16.msra.mxu0 %v926
    %1484 = vmatprep.mubr.bf16.mxu0 %v280
    %1485 = vmatmul.mubr.bf16.gmra.mxu0 %v272
    %v1486 = vpop.f32.mrf.mxu0
    %v1487 = vadd.f32 %v254, %v1486
    %v1488 = vpop.f32.mrf.mxu0
    %v1489 = vadd.f32 %v258, %v1488
    %v1490 = vpop.f32.mrf.mxu0
    %v1491 = vpop.f32.mrf.mxu0
    %1492 = vdwg.mxu0
    %1493 = vmatprep.subr.bf16.mxu0 %v987
    %1494 = vmatpush1.bf16.msra.mxu0 %v986
    %1495 = vmatprep.subr.bf16.mxu0 %v983
    %1496 = vmatpush1.bf16.msra.mxu0 %v982
    %1497 = vmatprep.subr.bf16.mxu0 %v979
    %1498 = vmatpush1.bf16.msra.mxu0 %v978
    %1499 = vmatprep.subr.bf16.mxu0 %v975
    %1500 = vmatpush1.bf16.msra.mxu0 %v974
    %1501 = vmatprep.subr.bf16.mxu0 %v971
    %1502 = vmatpush1.bf16.msra.mxu0 %v970
    %1503 = vmatprep.subr.bf16.mxu0 %v967
    %1504 = vmatpush1.bf16.msra.mxu0 %v966
    %1505 = vmatprep.subr.bf16.mxu0 %v963
    %1506 = vmatpush1.bf16.msra.mxu0 %v962
    %1507 = vmatprep.subr.bf16.mxu0 %v959
    %1508 = vmatpush1.bf16.msra.mxu0 %v958
    %1509 = vmatprep.subr.bf16.mxu0 %v1019
    %1510 = vmatpush2.bf16.msra.mxu0 %v1018
    %1511 = vmatprep.subr.bf16.mxu0 %v1015
    %1512 = vmatpush2.bf16.msra.mxu0 %v1014
    %1513 = vmatprep.subr.bf16.mxu0 %v1011
    %1514 = vmatpush2.bf16.msra.mxu0 %v1010
    %1515 = vmatprep.subr.bf16.mxu0 %v1007
    %1516 = vmatpush2.bf16.msra.mxu0 %v1006
    %1517 = vmatprep.subr.bf16.mxu0 %v1003
    %1518 = vmatpush2.bf16.msra.mxu0 %v1002
    %1519 = vmatprep.subr.bf16.mxu0 %v999
    %1520 = vmatpush2.bf16.msra.mxu0 %v998
    %1521 = vmatprep.subr.bf16.mxu0 %v995
    %1522 = vmatpush2.bf16.msra.mxu0 %v994
    %1523 = vmatprep.subr.bf16.mxu0 %v991
    %1524 = vmatpush2.bf16.msra.mxu0 %v990
    %1525 = vmatprep.mubr.bf16.mxu0 %v281
    %1526 = vmatmul.mubr.bf16.gmra.mxu0 %v279
    %v1527 = vpop.f32.mrf.mxu0
    %v1528 = vadd.f32 %v1487, %v1527
    %v1529 = vpop.f32.mrf.mxu0
    %v1530 = vadd.f32 %v1489, %v1529
    %v1531 = vpop.f32.mrf.mxu0
    %v1532 = vpop.f32.mrf.mxu0
    %1533 = vdwg.mxu0
    %1534 = vmatprep.subr.bf16.mxu0 %v1051
    %1535 = vmatpush1.bf16.msra.mxu0 %v1050
    %1536 = vmatprep.subr.bf16.mxu0 %v1047
    %1537 = vmatpush1.bf16.msra.mxu0 %v1046
    %1538 = vmatprep.subr.bf16.mxu0 %v1043
    %1539 = vmatpush1.bf16.msra.mxu0 %v1042
    %1540 = vmatprep.subr.bf16.mxu0 %v1039
    %1541 = vmatpush1.bf16.msra.mxu0 %v1038
    %1542 = vmatprep.subr.bf16.mxu0 %v1035
    %1543 = vmatpush1.bf16.msra.mxu0 %v1034
    %1544 = vmatprep.subr.bf16.mxu0 %v1031
    %1545 = vmatpush1.bf16.msra.mxu0 %v1030
    %1546 = vmatprep.subr.bf16.mxu0 %v1027
    %1547 = vmatpush1.bf16.msra.mxu0 %v1026
    %1548 = vmatprep.subr.bf16.mxu0 %v1023
    %1549 = vmatpush1.bf16.msra.mxu0 %v1022
    %1550 = vmatprep.subr.bf16.mxu0 %v1083
    %1551 = vmatpush2.bf16.msra.mxu0 %v1082
    %1552 = vmatprep.subr.bf16.mxu0 %v1079
    %1553 = vmatpush2.bf16.msra.mxu0 %v1078
    %1554 = vmatprep.subr.bf16.mxu0 %v1075
    %1555 = vmatpush2.bf16.msra.mxu0 %v1074
    %1556 = vmatprep.subr.bf16.mxu0 %v1071
    %1557 = vmatpush2.bf16.msra.mxu0 %v1070
    %1558 = vmatprep.subr.bf16.mxu0 %v1067
    %1559 = vmatpush2.bf16.msra.mxu0 %v1066
    %1560 = vmatprep.subr.bf16.mxu0 %v1063
    %1561 = vmatpush2.bf16.msra.mxu0 %v1062
    %1562 = vmatprep.subr.bf16.mxu0 %v1059
    %1563 = vmatpush2.bf16.msra.mxu0 %v1058
    %1564 = vmatprep.subr.bf16.mxu0 %v1055
    %1565 = vmatpush2.bf16.msra.mxu0 %v1054
    %1566 = vmatprep.mubr.bf16.mxu0 %v297
    %1567 = vmatmul.mubr.bf16.gmra.mxu0 %v289
    %v1568 = vpop.f32.mrf.mxu0
    %v1569 = vadd.f32 %v1528, %v1568
    %v1570 = vpop.f32.mrf.mxu0
    %v1571 = vadd.f32 %v1530, %v1570
    %v1572 = vpop.f32.mrf.mxu0
    %v1573 = vpop.f32.mrf.mxu0
    %1574 = vdwg.mxu0
    %1575 = vmatprep.subr.bf16.mxu0 0
    %1576 = vmatpush1.bf16.msra.mxu0 0
    %1577 = vmatprep.subr.bf16.mxu0 0
    %1578 = vmatpush1.bf16.msra.mxu0 0
    %1579 = vmatprep.subr.bf16.mxu0 0
    %1580 = vmatpush1.bf16.msra.mxu0 0
    %1581 = vmatprep.subr.bf16.mxu0 0
    %1582 = vmatpush1.bf16.msra.mxu0 0
    %1583 = vmatprep.subr.bf16.mxu0 0
    %1584 = vmatpush1.bf16.msra.mxu0 0
    %1585 = vmatprep.subr.bf16.mxu0 0
    %1586 = vmatpush1.bf16.msra.mxu0 0
    %1587 = vmatprep.subr.bf16.mxu0 0
    %1588 = vmatpush1.bf16.msra.mxu0 0
    %1589 = vmatprep.subr.bf16.mxu0 %v1087
    %1590 = vmatpush1.bf16.msra.mxu0 %v1086
    %1591 = vmatprep.subr.bf16.mxu0 0
    %1592 = vmatpush2.bf16.msra.mxu0 0
    %1593 = vmatprep.subr.bf16.mxu0 0
    %1594 = vmatpush2.bf16.msra.mxu0 0
    %1595 = vmatprep.subr.bf16.mxu0 0
    %1596 = vmatpush2.bf16.msra.mxu0 0
    %1597 = vmatprep.subr.bf16.mxu0 0
    %1598 = vmatpush2.bf16.msra.mxu0 0
    %1599 = vmatprep.subr.bf16.mxu0 0
    %1600 = vmatpush2.bf16.msra.mxu0 0
    %1601 = vmatprep.subr.bf16.mxu0 0
    %1602 = vmatpush2.bf16.msra.mxu0 0
    %1603 = vmatprep.subr.bf16.mxu0 0
    %1604 = vmatpush2.bf16.msra.mxu0 0
    %1605 = vmatprep.subr.bf16.mxu0 0
    %1606 = vmatpush2.bf16.msra.mxu0 0
    %1607 = vmatprep.mubr.bf16.mxu0 0
    %1608 = vmatmul.mubr.bf16.gmra.mxu0 %v1286
    %v1609 = vpop.f32.mrf.mxu0
    %v1610 = vadd.f32 %v1569, %v1609
    %v1611 = vpop.f32.mrf.mxu0
    %v1612 = vadd.f32 %v1571, %v1611
    %v1613 = vpop.f32.mrf.mxu0
    %v1614 = vpop.f32.mrf.mxu0
    %1615 = vdwg.mxu0
    %vm1616 = vcmp.gt.f32.partialorder %v1446, 0.0
    %vm1617 = vcmp.gt.f32.partialorder %v1448, 0.0
    %vm1618 = vcmp.gt.f32.partialorder %v1610, 0.0
    %vm1619 = vcmp.gt.f32.partialorder %v1612, 0.0
    %v1620 = vmul.f32 %v1446, 0.01
    %v1621 = vmul.f32 %v1448, 0.01
    %v1622 = vmul.f32 %v1610, 0.01
    %v1623 = vmul.f32 %v1612, 0.01
    %v1624 = vsel %vm1616, %v1446, %v1620
    %v1625 = vsel %vm1617, %v1448, %v1621
    %v1626 = vsel %vm1618, %v1610, %v1622
    %v1627 = vsel %vm1619, %v1612, %v1623
    %v1628 = vpack.c.bf16 %v1624, %v1624
    %v1629 = vpack.c.bf16 %v1625, %v1625
    %v1630 = vpack.c.bf16 %v1626, %v1626
    %v1631 = vpack.c.bf16 %v1627, %v1627
    %v1632 = vld [vmem:[%s4] sm:$0xff]
    %v1633 = vld [vmem:[%s4 + $0x8] sm:$0xff]
    %v1634 = vld [vmem:[%s4 + $0x10] sm:$0xff]
    %v1635 = vld [vmem:[%s4 + $0x18] sm:$0xff]
    %v1636 = vld [vmem:[%s4 + $0x20] sm:$0xff]
    %v1637 = vld [vmem:[%s4 + $0x28] sm:$0xff]
    %v1638 = vld [vmem:[%s4 + $0x30] sm:$0xff]
    %v1639 = vld [vmem:[%s4 + $0x38] sm:$0xff]
    %v1640 = vld [vmem:[%s4 + $0x40] sm:$0xff]
    %v1641 = vld [vmem:[%s4 + $0x48] sm:$0xff]
    %v1642 = vld [vmem:[%s4 + $0x50] sm:$0xff]
    %v1643 = vld [vmem:[%s4 + $0x58] sm:$0xff]
    %v1644 = vld [vmem:[%s4 + $0x60] sm:$0xff]
    %v1645 = vld [vmem:[%s4 + $0x68] sm:$0xff]
    %v1646 = vld [vmem:[%s4 + $0x70] sm:$0xff]
    %v1647 = vld [vmem:[%s4 + $0x78] sm:$0xff]
    %v1648 = vld [vmem:[%s4 + $0x80] sm:$0xff]
    %v1649 = vld [vmem:[%s4 + $0x88] sm:$0xff]
    %v1650 = vld [vmem:[%s4 + $0x90] sm:$0xff]
    %v1651 = vld [vmem:[%s4 + $0x98] sm:$0xff]
    %v1652 = vld [vmem:[%s4 + $0xa0] sm:$0xff]
    %v1653 = vld [vmem:[%s4 + $0xa8] sm:$0xff]
    %v1654 = vld [vmem:[%s4 + $0xb0] sm:$0xff]
    %v1655 = vld [vmem:[%s4 + $0xb8] sm:$0xff]
    %v1656 = vld [vmem:[%s4 + $0xc0] sm:$0xff]
    %v1657 = vld [vmem:[%s4 + $0xc8] sm:$0xff]
    %v1658 = vld [vmem:[%s4 + $0xd0] sm:$0xff]
    %v1659 = vld [vmem:[%s4 + $0xd8] sm:$0xff]
    %v1660 = vld [vmem:[%s4 + $0xe0] sm:$0xff]
    %v1661 = vld [vmem:[%s4 + $0xe8] sm:$0xff]
    %v1662 = vld [vmem:[%s4 + $0xf0] sm:$0xff]
    %v1663 = vld [vmem:[%s4 + $0xf8] sm:$0xff]
    %v1664 = vld [vmem:[%s4 + $0x100] sm:$0xff]
    %v1665 = vld [vmem:[%s4 + $0x108] sm:$0xff]
    %v1666 = vld [vmem:[%s4 + $0x110] sm:$0xff]
    %v1667 = vld [vmem:[%s4 + $0x118] sm:$0xff]
    %v1668 = vld [vmem:[%s4 + $0x120] sm:$0xff]
    %v1669 = vld [vmem:[%s4 + $0x128] sm:$0xff]
    %v1670 = vld [vmem:[%s4 + $0x130] sm:$0xff]
    %v1671 = vld [vmem:[%s4 + $0x138] sm:$0xff]
    %v1672 = vld [vmem:[%s4 + $0x140] sm:$0xff]
    %v1673 = vld [vmem:[%s4 + $0x148] sm:$0xff]
    %v1674 = vld [vmem:[%s4 + $0x150] sm:$0xff]
    %v1675 = vld [vmem:[%s4 + $0x158] sm:$0xff]
    %v1676 = vld [vmem:[%s4 + $0x160] sm:$0xff]
    %v1677 = vld [vmem:[%s4 + $0x168] sm:$0xff]
    %v1678 = vld [vmem:[%s4 + $0x170] sm:$0xff]
    %v1679 = vld [vmem:[%s4 + $0x178] sm:$0xff]
    %v1680 = vld [vmem:[%s4 + $0x180] sm:$0xff]
    %v1681 = vld [vmem:[%s4 + $0x188] sm:$0xff]
    %v1682 = vld [vmem:[%s4 + $0x190] sm:$0xff]
    %v1683 = vld [vmem:[%s4 + $0x198] sm:$0xff]
    %v1684 = vld [vmem:[%s4 + $0x1a0] sm:$0xff]
    %v1685 = vld [vmem:[%s4 + $0x1a8] sm:$0xff]
    %v1686 = vld [vmem:[%s4 + $0x1b0] sm:$0xff]
    %v1687 = vld [vmem:[%s4 + $0x1b8] sm:$0xff]
    %v1688 = vld [vmem:[%s4 + $0x1c0] sm:$0xff]
    %v1689 = vld [vmem:[%s4 + $0x1c8] sm:$0xff]
    %v1690 = vld [vmem:[%s4 + $0x1d0] sm:$0xff]
    %v1691 = vld [vmem:[%s4 + $0x1d8] sm:$0xff]
    %v1692 = vld [vmem:[%s4 + $0x1e0] sm:$0xff]
    %v1693 = vld [vmem:[%s4 + $0x1e8] sm:$0xff]
    %v1694 = vld [vmem:[%s4 + $0x1f0] sm:$0xff]
    %v1695 = vld [vmem:[%s4 + $0x1f8] sm:$0xff]
    %v1696 = vld [vmem:[%s5] sm:$0x3]
    %v1698 = vlaneseq
    %v1699 = vshrl.u32 %v1698, 7
    %v1700 = vsub.s32 0, %v1699
    %v1701 = vrot.slane %v1696, %v1700
    %v1702 = vlaneseq
    %v1703 = vshrl.u32 %v1702, 7
    %v1704 = vsub.s32 1, %v1703
    %v1705 = vrot.slane %v1696, %v1704
    %v1772 = vunpack.c.l.b16 %v1632
    %v1773 = vunpack.c.h.b16 %v1632
    %v1774 = vunpack.c.l.b16 %v1633
    %v1775 = vunpack.c.h.b16 %v1633
    %v1776 = vunpack.c.l.b16 %v1634
    %v1777 = vunpack.c.h.b16 %v1634
    %v1778 = vunpack.c.l.b16 %v1635
    %v1779 = vunpack.c.h.b16 %v1635
    %v1780 = vunpack.c.l.b16 %v1636
    %v1781 = vunpack.c.h.b16 %v1636
    %v1782 = vunpack.c.l.b16 %v1637
    %v1783 = vunpack.c.h.b16 %v1637
    %v1784 = vunpack.c.l.b16 %v1638
    %v1785 = vunpack.c.h.b16 %v1638
    %v1786 = vunpack.c.l.b16 %v1639
    %v1787 = vunpack.c.h.b16 %v1639
    %v1788 = vunpack.c.l.b16 %v1640
    %v1789 = vunpack.c.h.b16 %v1640
    %v1790 = vunpack.c.l.b16 %v1641
    %v1791 = vunpack.c.h.b16 %v1641
    %v1792 = vunpack.c.l.b16 %v1642
    %v1793 = vunpack.c.h.b16 %v1642
    %v1794 = vunpack.c.l.b16 %v1643
    %v1795 = vunpack.c.h.b16 %v1643
    %v1796 = vunpack.c.l.b16 %v1644
    %v1797 = vunpack.c.h.b16 %v1644
    %v1798 = vunpack.c.l.b16 %v1645
    %v1799 = vunpack.c.h.b16 %v1645
    %v1800 = vunpack.c.l.b16 %v1646
    %v1801 = vunpack.c.h.b16 %v1646
    %v1802 = vunpack.c.l.b16 %v1647
    %v1803 = vunpack.c.h.b16 %v1647
    %v1804 = vunpack.c.l.b16 %v1648
    %v1805 = vunpack.c.h.b16 %v1648
    %v1806 = vunpack.c.l.b16 %v1649
    %v1807 = vunpack.c.h.b16 %v1649
    %v1808 = vunpack.c.l.b16 %v1650
    %v1809 = vunpack.c.h.b16 %v1650
    %v1810 = vunpack.c.l.b16 %v1651
    %v1811 = vunpack.c.h.b16 %v1651
    %v1812 = vunpack.c.l.b16 %v1652
    %v1813 = vunpack.c.h.b16 %v1652
    %v1814 = vunpack.c.l.b16 %v1653
    %v1815 = vunpack.c.h.b16 %v1653
    %v1816 = vunpack.c.l.b16 %v1654
    %v1817 = vunpack.c.h.b16 %v1654
    %v1818 = vunpack.c.l.b16 %v1655
    %v1819 = vunpack.c.h.b16 %v1655
    %v1820 = vunpack.c.l.b16 %v1656
    %v1821 = vunpack.c.h.b16 %v1656
    %v1822 = vunpack.c.l.b16 %v1657
    %v1823 = vunpack.c.h.b16 %v1657
    %v1824 = vunpack.c.l.b16 %v1658
    %v1825 = vunpack.c.h.b16 %v1658
    %v1826 = vunpack.c.l.b16 %v1659
    %v1827 = vunpack.c.h.b16 %v1659
    %v1828 = vunpack.c.l.b16 %v1660
    %v1829 = vunpack.c.h.b16 %v1660
    %v1830 = vunpack.c.l.b16 %v1661
    %v1831 = vunpack.c.h.b16 %v1661
    %v1832 = vunpack.c.l.b16 %v1662
    %v1833 = vunpack.c.h.b16 %v1662
    %v1834 = vunpack.c.l.b16 %v1663
    %v1835 = vunpack.c.h.b16 %v1663
    %v1836 = vunpack.c.l.b16 %v1664
    %v1837 = vunpack.c.h.b16 %v1664
    %v1838 = vunpack.c.l.b16 %v1665
    %v1839 = vunpack.c.h.b16 %v1665
    %v1840 = vunpack.c.l.b16 %v1666
    %v1841 = vunpack.c.h.b16 %v1666
    %v1842 = vunpack.c.l.b16 %v1667
    %v1843 = vunpack.c.h.b16 %v1667
    %v1844 = vunpack.c.l.b16 %v1668
    %v1845 = vunpack.c.h.b16 %v1668
    %v1846 = vunpack.c.l.b16 %v1669
    %v1847 = vunpack.c.h.b16 %v1669
    %v1848 = vunpack.c.l.b16 %v1670
    %v1849 = vunpack.c.h.b16 %v1670
    %v1850 = vunpack.c.l.b16 %v1671
    %v1851 = vunpack.c.h.b16 %v1671
    %v1852 = vunpack.c.l.b16 %v1672
    %v1853 = vunpack.c.h.b16 %v1672
    %v1854 = vunpack.c.l.b16 %v1673
    %v1855 = vunpack.c.h.b16 %v1673
    %v1856 = vunpack.c.l.b16 %v1674
    %v1857 = vunpack.c.h.b16 %v1674
    %v1858 = vunpack.c.l.b16 %v1675
    %v1859 = vunpack.c.h.b16 %v1675
    %v1860 = vunpack.c.l.b16 %v1676
    %v1861 = vunpack.c.h.b16 %v1676
    %v1862 = vunpack.c.l.b16 %v1677
    %v1863 = vunpack.c.h.b16 %v1677
    %v1864 = vunpack.c.l.b16 %v1678
    %v1865 = vunpack.c.h.b16 %v1678
    %v1866 = vunpack.c.l.b16 %v1679
    %v1867 = vunpack.c.h.b16 %v1679
    %v1868 = vunpack.c.l.b16 %v1680
    %v1869 = vunpack.c.h.b16 %v1680
    %v1870 = vunpack.c.l.b16 %v1681
    %v1871 = vunpack.c.h.b16 %v1681
    %v1872 = vunpack.c.l.b16 %v1682
    %v1873 = vunpack.c.h.b16 %v1682
    %v1874 = vunpack.c.l.b16 %v1683
    %v1875 = vunpack.c.h.b16 %v1683
    %v1876 = vunpack.c.l.b16 %v1684
    %v1877 = vunpack.c.h.b16 %v1684
    %v1878 = vunpack.c.l.b16 %v1685
    %v1879 = vunpack.c.h.b16 %v1685
    %v1880 = vunpack.c.l.b16 %v1686
    %v1881 = vunpack.c.h.b16 %v1686
    %v1882 = vunpack.c.l.b16 %v1687
    %v1883 = vunpack.c.h.b16 %v1687
    %v1884 = vunpack.c.l.b16 %v1688
    %v1885 = vunpack.c.h.b16 %v1688
    %v1886 = vunpack.c.l.b16 %v1689
    %v1887 = vunpack.c.h.b16 %v1689
    %v1888 = vunpack.c.l.b16 %v1690
    %v1889 = vunpack.c.h.b16 %v1690
    %v1890 = vunpack.c.l.b16 %v1691
    %v1891 = vunpack.c.h.b16 %v1691
    %v1892 = vunpack.c.l.b16 %v1692
    %v1893 = vunpack.c.h.b16 %v1692
    %v1894 = vunpack.c.l.b16 %v1693
    %v1895 = vunpack.c.h.b16 %v1693
    %v1896 = vunpack.c.l.b16 %v1694
    %v1897 = vunpack.c.h.b16 %v1694
    %v1898 = vunpack.c.l.b16 %v1695
    %v1899 = vunpack.c.h.b16 %v1695
    %v1900 = vpack.c.b16 %v1774, %v1772
    %v1901 = vpack.c.b16 %v1775, %v1773
    %v1902 = vpack.c.b16 %v1778, %v1776
    %v1903 = vpack.c.b16 %v1779, %v1777
    %v1904 = vpack.c.b16 %v1782, %v1780
    %v1905 = vpack.c.b16 %v1783, %v1781
    %v1906 = vpack.c.b16 %v1786, %v1784
    %v1907 = vpack.c.b16 %v1787, %v1785
    %v1908 = vpack.c.b16 %v1790, %v1788
    %v1909 = vpack.c.b16 %v1791, %v1789
    %v1910 = vpack.c.b16 %v1794, %v1792
    %v1911 = vpack.c.b16 %v1795, %v1793
    %v1912 = vpack.c.b16 %v1798, %v1796
    %v1913 = vpack.c.b16 %v1799, %v1797
    %v1914 = vpack.c.b16 %v1802, %v1800
    %v1915 = vpack.c.b16 %v1803, %v1801
    %v1916 = vpack.c.b16 %v1806, %v1804
    %v1917 = vpack.c.b16 %v1807, %v1805
    %v1918 = vpack.c.b16 %v1810, %v1808
    %v1919 = vpack.c.b16 %v1811, %v1809
    %v1920 = vpack.c.b16 %v1814, %v1812
    %v1921 = vpack.c.b16 %v1815, %v1813
    %v1922 = vpack.c.b16 %v1818, %v1816
    %v1923 = vpack.c.b16 %v1819, %v1817
    %v1924 = vpack.c.b16 %v1822, %v1820
    %v1925 = vpack.c.b16 %v1823, %v1821
    %v1926 = vpack.c.b16 %v1826, %v1824
    %v1927 = vpack.c.b16 %v1827, %v1825
    %v1928 = vpack.c.b16 %v1830, %v1828
    %v1929 = vpack.c.b16 %v1831, %v1829
    %v1930 = vpack.c.b16 %v1834, %v1832
    %v1931 = vpack.c.b16 %v1835, %v1833
    %v1932 = vpack.c.b16 %v1838, %v1836
    %v1933 = vpack.c.b16 %v1839, %v1837
    %v1934 = vpack.c.b16 %v1842, %v1840
    %v1935 = vpack.c.b16 %v1843, %v1841
    %v1936 = vpack.c.b16 %v1846, %v1844
    %v1937 = vpack.c.b16 %v1847, %v1845
    %v1938 = vpack.c.b16 %v1850, %v1848
    %v1939 = vpack.c.b16 %v1851, %v1849
    %v1940 = vpack.c.b16 %v1854, %v1852
    %v1941 = vpack.c.b16 %v1855, %v1853
    %v1942 = vpack.c.b16 %v1858, %v1856
    %v1943 = vpack.c.b16 %v1859, %v1857
    %v1944 = vpack.c.b16 %v1862, %v1860
    %v1945 = vpack.c.b16 %v1863, %v1861
    %v1946 = vpack.c.b16 %v1866, %v1864
    %v1947 = vpack.c.b16 %v1867, %v1865
    %v1948 = vpack.c.b16 %v1870, %v1868
    %v1949 = vpack.c.b16 %v1871, %v1869
    %v1950 = vpack.c.b16 %v1874, %v1872
    %v1951 = vpack.c.b16 %v1875, %v1873
    %v1952 = vpack.c.b16 %v1878, %v1876
    %v1953 = vpack.c.b16 %v1879, %v1877
    %v1954 = vpack.c.b16 %v1882, %v1880
    %v1955 = vpack.c.b16 %v1883, %v1881
    %v1956 = vpack.c.b16 %v1886, %v1884
    %v1957 = vpack.c.b16 %v1887, %v1885
    %v1958 = vpack.c.b16 %v1890, %v1888
    %v1959 = vpack.c.b16 %v1891, %v1889
    %v1960 = vpack.c.b16 %v1894, %v1892
    %v1961 = vpack.c.b16 %v1895, %v1893
    %v1962 = vpack.c.b16 %v1898, %v1896
    %v1963 = vpack.c.b16 %v1899, %v1897
    %2028 = vmatprep.subr.bf16.mxu0 %v1915
    %2029 = vmatpush1.bf16.msra.mxu0 %v1914
    %2030 = vmatprep.subr.bf16.mxu0 %v1913
    %2031 = vmatpush1.bf16.msra.mxu0 %v1912
    %2032 = vmatprep.subr.bf16.mxu0 %v1911
    %2033 = vmatpush1.bf16.msra.mxu0 %v1910
    %2034 = vmatprep.subr.bf16.mxu0 %v1909
    %2035 = vmatpush1.bf16.msra.mxu0 %v1908
    %2036 = vmatprep.subr.bf16.mxu0 %v1907
    %2037 = vmatpush1.bf16.msra.mxu0 %v1906
    %2038 = vmatprep.subr.bf16.mxu0 %v1905
    %2039 = vmatpush1.bf16.msra.mxu0 %v1904
    %2040 = vmatprep.subr.bf16.mxu0 %v1903
    %2041 = vmatpush1.bf16.msra.mxu0 %v1902
    %2042 = vmatprep.subr.bf16.mxu0 %v1901
    %2043 = vmatpush1.bf16.msra.mxu0 %v1900
    %2044 = vmatprep.subr.bf16.mxu0 %v1931
    %2045 = vmatpush2.bf16.msra.mxu0 %v1930
    %2046 = vmatprep.subr.bf16.mxu0 %v1929
    %2047 = vmatpush2.bf16.msra.mxu0 %v1928
    %2048 = vmatprep.subr.bf16.mxu0 %v1927
    %2049 = vmatpush2.bf16.msra.mxu0 %v1926
    %2050 = vmatprep.subr.bf16.mxu0 %v1925
    %2051 = vmatpush2.bf16.msra.mxu0 %v1924
    %2052 = vmatprep.subr.bf16.mxu0 %v1923
    %2053 = vmatpush2.bf16.msra.mxu0 %v1922
    %2054 = vmatprep.subr.bf16.mxu0 %v1921
    %2055 = vmatpush2.bf16.msra.mxu0 %v1920
    %2056 = vmatprep.subr.bf16.mxu0 %v1919
    %2057 = vmatpush2.bf16.msra.mxu0 %v1918
    %2058 = vmatprep.subr.bf16.mxu0 %v1917
    %2059 = vmatpush2.bf16.msra.mxu0 %v1916
    %2060 = vmatprep.mubr.bf16.mxu0 %v1629
    %2061 = vmatmul.mubr.bf16.gmra.mxu0 %v1628
    %v2062 = vpop.f32.mrf.mxu0
    %v2063 = vadd.f32 %v1701, %v2062
    %v2064 = vpop.f32.mrf.mxu0
    %v2065 = vadd.f32 %v1705, %v2064
    %v2066 = vpop.f32.mrf.mxu0
    %v2067 = vpop.f32.mrf.mxu0
    %2068 = vdwg.mxu0
    %2069 = vmatprep.subr.bf16.mxu0 %v1947
    %2070 = vmatpush1.bf16.msra.mxu0 %v1946
    %2071 = vmatprep.subr.bf16.mxu0 %v1945
    %2072 = vmatpush1.bf16.msra.mxu0 %v1944
    %2073 = vmatprep.subr.bf16.mxu0 %v1943
    %2074 = vmatpush1.bf16.msra.mxu0 %v1942
    %2075 = vmatprep.subr.bf16.mxu0 %v1941
    %2076 = vmatpush1.bf16.msra.mxu0 %v1940
    %2077 = vmatprep.subr.bf16.mxu0 %v1939
    %2078 = vmatpush1.bf16.msra.mxu0 %v1938
    %2079 = vmatprep.subr.bf16.mxu0 %v1937
    %2080 = vmatpush1.bf16.msra.mxu0 %v1936
    %2081 = vmatprep.subr.bf16.mxu0 %v1935
    %2082 = vmatpush1.bf16.msra.mxu0 %v1934
    %2083 = vmatprep.subr.bf16.mxu0 %v1933
    %2084 = vmatpush1.bf16.msra.mxu0 %v1932
    %2085 = vmatprep.subr.bf16.mxu0 %v1963
    %2086 = vmatpush2.bf16.msra.mxu0 %v1962
    %2087 = vmatprep.subr.bf16.mxu0 %v1961
    %2088 = vmatpush2.bf16.msra.mxu0 %v1960
    %2089 = vmatprep.subr.bf16.mxu0 %v1959
    %2090 = vmatpush2.bf16.msra.mxu0 %v1958
    %2091 = vmatprep.subr.bf16.mxu0 %v1957
    %2092 = vmatpush2.bf16.msra.mxu0 %v1956
    %2093 = vmatprep.subr.bf16.mxu0 %v1955
    %2094 = vmatpush2.bf16.msra.mxu0 %v1954
    %2095 = vmatprep.subr.bf16.mxu0 %v1953
    %2096 = vmatpush2.bf16.msra.mxu0 %v1952
    %2097 = vmatprep.subr.bf16.mxu0 %v1951
    %2098 = vmatpush2.bf16.msra.mxu0 %v1950
    %2099 = vmatprep.subr.bf16.mxu0 %v1949
    %2100 = vmatpush2.bf16.msra.mxu0 %v1948
    %2101 = vmatprep.mubr.bf16.mxu0 %v1631
    %2102 = vmatmul.mubr.bf16.gmra.mxu0 %v1630
    %v2103 = vpop.f32.mrf.mxu0
    %v2104 = vadd.f32 %v2063, %v2103
    %v2105 = vpop.f32.mrf.mxu0
    %v2106 = vadd.f32 %v2065, %v2105
    %v2107 = vpop.f32.mrf.mxu0
    %v2108 = vpop.f32.mrf.mxu0
    %2109 = vdwg.mxu0
    %vm2110 = vcmp.gt.f32.partialorder %v2104, 0.0
    %vm2111 = vcmp.gt.f32.partialorder %v2106, 0.0
    %v2112 = vmul.f32 %v2104, 0.01
    %v2113 = vmul.f32 %v2106, 0.01
    %v2114 = vsel %vm2110, %v2104, %v2112
    %v2115 = vsel %vm2111, %v2106, %v2113
    %v2116 = vpack.c.bf16 %v2114, %v2114
    %v2117 = vpack.c.bf16 %v2115, %v2115
    %v2118 = vld [vmem:[%s6] sm:$0xf]
    %v2119 = vld [vmem:[%s6 + $0x4] sm:$0xf]
    %v2120 = vld [vmem:[%s6 + $0x8] sm:$0xf]
    %v2121 = vld [vmem:[%s6 + $0xc] sm:$0xf]
    %v2122 = vld [vmem:[%s6 + $0x10] sm:$0xf]
    %v2123 = vld [vmem:[%s6 + $0x14] sm:$0xf]
    %v2124 = vld [vmem:[%s6 + $0x18] sm:$0xf]
    %v2125 = vld [vmem:[%s6 + $0x1c] sm:$0xf]
    %v2126 = vld [vmem:[%s6 + $0x20] sm:$0xf]
    %v2127 = vld [vmem:[%s6 + $0x24] sm:$0xf]
    %v2128 = vld [vmem:[%s6 + $0x28] sm:$0xf]
    %v2129 = vld [vmem:[%s6 + $0x2c] sm:$0xf]
    %v2130 = vld [vmem:[%s6 + $0x30] sm:$0xf]
    %v2131 = vld [vmem:[%s6 + $0x34] sm:$0xf]
    %v2132 = vld [vmem:[%s6 + $0x38] sm:$0xf]
    %v2133 = vld [vmem:[%s6 + $0x3c] sm:$0xf]
    %v2134 = vld [vmem:[%s6 + $0x40] sm:$0xf]
    %v2135 = vld [vmem:[%s6 + $0x44] sm:$0xf]
    %v2136 = vld [vmem:[%s6 + $0x48] sm:$0xf]
    %v2137 = vld [vmem:[%s6 + $0x4c] sm:$0xf]
    %v2138 = vld [vmem:[%s6 + $0x50] sm:$0xf]
    %v2139 = vld [vmem:[%s6 + $0x54] sm:$0xf]
    %v2140 = vld [vmem:[%s6 + $0x58] sm:$0xf]
    %v2141 = vld [vmem:[%s6 + $0x5c] sm:$0xf]
    %v2142 = vld [vmem:[%s6 + $0x60] sm:$0xf]
    %v2143 = vld [vmem:[%s6 + $0x64] sm:$0xf]
    %v2144 = vld [vmem:[%s6 + $0x68] sm:$0xf]
    %v2145 = vld [vmem:[%s6 + $0x6c] sm:$0xf]
    %v2146 = vld [vmem:[%s6 + $0x70] sm:$0xf]
    %v2147 = vld [vmem:[%s6 + $0x74] sm:$0xf]
    %v2148 = vld [vmem:[%s6 + $0x78] sm:$0xf]
    %v2149 = vld [vmem:[%s6 + $0x7c] sm:$0xf]
    %v2150 = vld [vmem:[%s7] sm:$0x1]
    %v2152 = vlaneseq
    %v2153 = vshrl.u32 %v2152, 7
    %v2154 = vsub.s32 0, %v2153
    %v2155 = vrot.slane %v2150, %v2154
    %v2189 = vunpack.c.l.b16 %v2118
    %v2190 = vunpack.c.l.b16 %v2119
    %v2191 = vunpack.c.l.b16 %v2120
    %v2192 = vunpack.c.l.b16 %v2121
    %v2193 = vunpack.c.l.b16 %v2122
    %v2194 = vunpack.c.l.b16 %v2123
    %v2195 = vunpack.c.l.b16 %v2124
    %v2196 = vunpack.c.l.b16 %v2125
    %v2197 = vunpack.c.l.b16 %v2126
    %v2198 = vunpack.c.l.b16 %v2127
    %v2199 = vunpack.c.l.b16 %v2128
    %v2200 = vunpack.c.l.b16 %v2129
    %v2201 = vunpack.c.l.b16 %v2130
    %v2202 = vunpack.c.l.b16 %v2131
    %v2203 = vunpack.c.l.b16 %v2132
    %v2204 = vunpack.c.l.b16 %v2133
    %v2205 = vunpack.c.l.b16 %v2134
    %v2206 = vunpack.c.l.b16 %v2135
    %v2207 = vunpack.c.l.b16 %v2136
    %v2208 = vunpack.c.l.b16 %v2137
    %v2209 = vunpack.c.l.b16 %v2138
    %v2210 = vunpack.c.l.b16 %v2139
    %v2211 = vunpack.c.l.b16 %v2140
    %v2212 = vunpack.c.l.b16 %v2141
    %v2213 = vunpack.c.l.b16 %v2142
    %v2214 = vunpack.c.l.b16 %v2143
    %v2215 = vunpack.c.l.b16 %v2144
    %v2216 = vunpack.c.l.b16 %v2145
    %v2217 = vunpack.c.l.b16 %v2146
    %v2218 = vunpack.c.l.b16 %v2147
    %v2219 = vunpack.c.l.b16 %v2148
    %v2220 = vunpack.c.l.b16 %v2149
    %v2221 = vpack.c.b16 %v2190, %v2189
    %v2222 = vpack.c.b16 %v2192, %v2191
    %v2223 = vpack.c.b16 %v2194, %v2193
    %v2224 = vpack.c.b16 %v2196, %v2195
    %v2225 = vpack.c.b16 %v2198, %v2197
    %v2226 = vpack.c.b16 %v2200, %v2199
    %v2227 = vpack.c.b16 %v2202, %v2201
    %v2228 = vpack.c.b16 %v2204, %v2203
    %v2229 = vpack.c.b16 %v2206, %v2205
    %v2230 = vpack.c.b16 %v2208, %v2207
    %v2231 = vpack.c.b16 %v2210, %v2209
    %v2232 = vpack.c.b16 %v2212, %v2211
    %v2233 = vpack.c.b16 %v2214, %v2213
    %v2234 = vpack.c.b16 %v2216, %v2215
    %v2235 = vpack.c.b16 %v2218, %v2217
    %v2236 = vpack.c.b16 %v2220, %v2219
    %2253 = vmatprep.subr.bf16.mxu0 0
    %2254 = vmatpush1.bf16.msra.mxu0 %v2228
    %2255 = vmatprep.subr.bf16.mxu0 0
    %2256 = vmatpush1.bf16.msra.mxu0 %v2227
    %2257 = vmatprep.subr.bf16.mxu0 0
    %2258 = vmatpush1.bf16.msra.mxu0 %v2226
    %2259 = vmatprep.subr.bf16.mxu0 0
    %2260 = vmatpush1.bf16.msra.mxu0 %v2225
    %2261 = vmatprep.subr.bf16.mxu0 0
    %2262 = vmatpush1.bf16.msra.mxu0 %v2224
    %2263 = vmatprep.subr.bf16.mxu0 0
    %2264 = vmatpush1.bf16.msra.mxu0 %v2223
    %2265 = vmatprep.subr.bf16.mxu0 0
    %2266 = vmatpush1.bf16.msra.mxu0 %v2222
    %2267 = vmatprep.subr.bf16.mxu0 0
    %2268 = vmatpush1.bf16.msra.mxu0 %v2221
    %2269 = vmatprep.subr.bf16.mxu0 0
    %2270 = vmatpush2.bf16.msra.mxu0 %v2236
    %2271 = vmatprep.subr.bf16.mxu0 0
    %2272 = vmatpush2.bf16.msra.mxu0 %v2235
    %2273 = vmatprep.subr.bf16.mxu0 0
    %2274 = vmatpush2.bf16.msra.mxu0 %v2234
    %2275 = vmatprep.subr.bf16.mxu0 0
    %2276 = vmatpush2.bf16.msra.mxu0 %v2233
    %2277 = vmatprep.subr.bf16.mxu0 0
    %2278 = vmatpush2.bf16.msra.mxu0 %v2232
    %2279 = vmatprep.subr.bf16.mxu0 0
    %2280 = vmatpush2.bf16.msra.mxu0 %v2231
    %2281 = vmatprep.subr.bf16.mxu0 0
    %2282 = vmatpush2.bf16.msra.mxu0 %v2230
    %2283 = vmatprep.subr.bf16.mxu0 0
    %2284 = vmatpush2.bf16.msra.mxu0 %v2229
    %2285 = vmatprep.mubr.bf16.mxu0 %v2117
    %2286 = vmatmul.mubr.bf16.gmra.mxu0 %v2116
    %v2287 = vpop.f32.mrf.mxu0
    %v2288 = vadd.f32 %v2155, %v2287
    %v2289 = vpop.f32.mrf.mxu0
    %v2290 = vpop.f32.mrf.mxu0
    %v2291 = vpop.f32.mrf.mxu0
    %2292 = vdwg.mxu0
    %vm2293 = vcmp.gt.f32.partialorder %v2288, 0.0
    %v2294 = vmul.f32 %v2288, 0.01
    %v2295 = vsel %vm2293, %v2288, %v2294
    %v2296 = vpack.c.bf16 %v2295, %v2295
    %v2297 = vld [vmem:[%s8] sm:$0xf]
    %v2298 = vld [vmem:[%s8 + $0x4] sm:$0xf]
    %v2299 = vld [vmem:[%s8 + $0x8] sm:$0xf]
    %v2300 = vld [vmem:[%s8 + $0xc] sm:$0xf]
    %v2301 = vld [vmem:[%s8 + $0x10] sm:$0xf]
    %v2302 = vld [vmem:[%s8 + $0x14] sm:$0xf]
    %v2303 = vld [vmem:[%s8 + $0x18] sm:$0xf]
    %v2304 = vld [vmem:[%s8 + $0x1c] sm:$0xf]
    %v2305 = vld [vmem:[%s8 + $0x20] sm:$0xf]
    %v2306 = vld [vmem:[%s8 + $0x24] sm:$0xf]
    %v2307 = vld [vmem:[%s8 + $0x28] sm:$0xf]
    %v2308 = vld [vmem:[%s8 + $0x2c] sm:$0xf]
    %v2309 = vld [vmem:[%s8 + $0x30] sm:$0xf]
    %v2310 = vld [vmem:[%s8 + $0x34] sm:$0xf]
    %v2311 = vld [vmem:[%s8 + $0x38] sm:$0xf]
    %v2312 = vld [vmem:[%s8 + $0x3c] sm:$0xf]
    %v2313 = vld [vmem:[%s9] sm:$0x1]
    %v2315 = vlaneseq
    %v2316 = vshrl.u32 %v2315, 7
    %v2317 = vsub.s32 0, %v2316
    %v2318 = vrot.slane %v2313, %v2317
    %v2336 = vunpack.c.l.b16 %v2297
    %v2337 = vunpack.c.l.b16 %v2298
    %v2338 = vunpack.c.l.b16 %v2299
    %v2339 = vunpack.c.l.b16 %v2300
    %v2340 = vunpack.c.l.b16 %v2301
    %v2341 = vunpack.c.l.b16 %v2302
    %v2342 = vunpack.c.l.b16 %v2303
    %v2343 = vunpack.c.l.b16 %v2304
    %v2344 = vunpack.c.l.b16 %v2305
    %v2345 = vunpack.c.l.b16 %v2306
    %v2346 = vunpack.c.l.b16 %v2307
    %v2347 = vunpack.c.l.b16 %v2308
    %v2348 = vunpack.c.l.b16 %v2309
    %v2349 = vunpack.c.l.b16 %v2310
    %v2350 = vunpack.c.l.b16 %v2311
    %v2351 = vunpack.c.l.b16 %v2312
    %v2352 = vpack.c.b16 %v2337, %v2336
    %v2353 = vpack.c.b16 %v2339, %v2338
    %v2354 = vpack.c.b16 %v2341, %v2340
    %v2355 = vpack.c.b16 %v2343, %v2342
    %v2356 = vpack.c.b16 %v2345, %v2344
    %v2357 = vpack.c.b16 %v2347, %v2346
    %v2358 = vpack.c.b16 %v2349, %v2348
    %v2359 = vpack.c.b16 %v2351, %v2350
    %2368 = vmatprep.subr.bf16.mxu0 0
    %2369 = vmatpush1.bf16.msra.mxu0 %v2359
    %2370 = vmatprep.subr.bf16.mxu0 0
    %2371 = vmatpush1.bf16.msra.mxu0 %v2358
    %2372 = vmatprep.subr.bf16.mxu0 0
    %2373 = vmatpush1.bf16.msra.mxu0 %v2357
    %2374 = vmatprep.subr.bf16.mxu0 0
    %2375 = vmatpush1.bf16.msra.mxu0 %v2356
    %2376 = vmatprep.subr.bf16.mxu0 0
    %2377 = vmatpush1.bf16.msra.mxu0 %v2355
    %2378 = vmatprep.subr.bf16.mxu0 0
    %2379 = vmatpush1.bf16.msra.mxu0 %v2354
    %2380 = vmatprep.subr.bf16.mxu0 0
    %2381 = vmatpush1.bf16.msra.mxu0 %v2353
    %2382 = vmatprep.subr.bf16.mxu0 0
    %2383 = vmatpush1.bf16.msra.mxu0 %v2352
    %2384 = vmatprep.subr.bf16.mxu0 0
    %2385 = vmatpush2.bf16.msra.mxu0 0
    %2386 = vmatprep.subr.bf16.mxu0 0
    %2387 = vmatpush2.bf16.msra.mxu0 0
    %2388 = vmatprep.subr.bf16.mxu0 0
    %2389 = vmatpush2.bf16.msra.mxu0 0
    %2390 = vmatprep.subr.bf16.mxu0 0
    %2391 = vmatpush2.bf16.msra.mxu0 0
    %2392 = vmatprep.subr.bf16.mxu0 0
    %2393 = vmatpush2.bf16.msra.mxu0 0
    %2394 = vmatprep.subr.bf16.mxu0 0
    %2395 = vmatpush2.bf16.msra.mxu0 0
    %2396 = vmatprep.subr.bf16.mxu0 0
    %2397 = vmatpush2.bf16.msra.mxu0 0
    %2398 = vmatprep.subr.bf16.mxu0 0
    %2399 = vmatpush2.bf16.msra.mxu0 0
    %2400 = vmatprep.mubr.bf16.mxu0 0
    %2401 = vmatmul.mubr.bf16.gmra.mxu0 %v2296
    %v2402 = vpop.f32.mrf.mxu0
    %v2403 = vadd.f32 %v2318, %v2402
    %v2404 = vpop.f32.mrf.mxu0
    %v2405 = vpop.f32.mrf.mxu0
    %v2406 = vpop.f32.mrf.mxu0
    %2407 = vdwg.mxu0
    %vm2408 = vcmp.gt.f32.partialorder %v2403, 0.0
    %v2409 = vmul.f32 %v2403, 0.01
    %v2410 = vsel %vm2408, %v2403, %v2409
    %v2411 = vpack.c.bf16 %v2410, %v2410
    %v2412 = vld [vmem:[%s10] sm:$0xf]
    %v2413 = vld [vmem:[%s10 + $0x4] sm:$0xf]
    %v2414 = vld [vmem:[%s10 + $0x8] sm:$0xf]
    %v2415 = vld [vmem:[%s10 + $0xc] sm:$0xf]
    %v2416 = vld [vmem:[%s10 + $0x10] sm:$0xf]
    %v2417 = vld [vmem:[%s10 + $0x14] sm:$0xf]
    %v2418 = vld [vmem:[%s10 + $0x18] sm:$0xf]
    %v2419 = vld [vmem:[%s10 + $0x1c] sm:$0xf]
    %v2420 = vld [vmem:[%s10 + $0x20] sm:$0xf]
    %v2421 = vld [vmem:[%s10 + $0x24] sm:$0xf]
    %v2422 = vld [vmem:[%s10 + $0x28] sm:$0xf]
    %v2423 = vld [vmem:[%s10 + $0x2c] sm:$0xf]
    %v2424 = vld [vmem:[%s10 + $0x30] sm:$0xf]
    %v2425 = vld [vmem:[%s10 + $0x34] sm:$0xf]
    %v2426 = vld [vmem:[%s10 + $0x38] sm:$0xf]
    %v2427 = vld [vmem:[%s10 + $0x3c] sm:$0xf]
    %v2428 = vld [vmem:[%s11] sm:$0x1]
    %v2430 = vlaneseq
    %v2431 = vshrl.u32 %v2430, 7
    %v2432 = vsub.s32 0, %v2431
    %v2433 = vrot.slane %v2428, %v2432
    %v2451 = vunpack.c.l.b16 %v2412
    %v2452 = vunpack.c.l.b16 %v2413
    %v2453 = vunpack.c.l.b16 %v2414
    %v2454 = vunpack.c.l.b16 %v2415
    %v2455 = vunpack.c.l.b16 %v2416
    %v2456 = vunpack.c.l.b16 %v2417
    %v2457 = vunpack.c.l.b16 %v2418
    %v2458 = vunpack.c.l.b16 %v2419
    %v2459 = vunpack.c.l.b16 %v2420
    %v2460 = vunpack.c.l.b16 %v2421
    %v2461 = vunpack.c.l.b16 %v2422
    %v2462 = vunpack.c.l.b16 %v2423
    %v2463 = vunpack.c.l.b16 %v2424
    %v2464 = vunpack.c.l.b16 %v2425
    %v2465 = vunpack.c.l.b16 %v2426
    %v2466 = vunpack.c.l.b16 %v2427
    %v2467 = vpack.c.b16 %v2452, %v2451
    %v2468 = vpack.c.b16 %v2454, %v2453
    %v2469 = vpack.c.b16 %v2456, %v2455
    %v2470 = vpack.c.b16 %v2458, %v2457
    %v2471 = vpack.c.b16 %v2460, %v2459
    %v2472 = vpack.c.b16 %v2462, %v2461
    %v2473 = vpack.c.b16 %v2464, %v2463
    %v2474 = vpack.c.b16 %v2466, %v2465
    %2483 = vmatprep.subr.bf16.mxu0 0
    %2484 = vmatpush1.bf16.msra.mxu0 %v2474
    %2485 = vmatprep.subr.bf16.mxu0 0
    %2486 = vmatpush1.bf16.msra.mxu0 %v2473
    %2487 = vmatprep.subr.bf16.mxu0 0
    %2488 = vmatpush1.bf16.msra.mxu0 %v2472
    %2489 = vmatprep.subr.bf16.mxu0 0
    %2490 = vmatpush1.bf16.msra.mxu0 %v2471
    %2491 = vmatprep.subr.bf16.mxu0 0
    %2492 = vmatpush1.bf16.msra.mxu0 %v2470
    %2493 = vmatprep.subr.bf16.mxu0 0
    %2494 = vmatpush1.bf16.msra.mxu0 %v2469
    %2495 = vmatprep.subr.bf16.mxu0 0
    %2496 = vmatpush1.bf16.msra.mxu0 %v2468
    %2497 = vmatprep.subr.bf16.mxu0 0
    %2498 = vmatpush1.bf16.msra.mxu0 %v2467
    %2499 = vmatprep.subr.bf16.mxu0 0
    %2500 = vmatpush2.bf16.msra.mxu0 0
    %2501 = vmatprep.subr.bf16.mxu0 0
    %2502 = vmatpush2.bf16.msra.mxu0 0
    %2503 = vmatprep.subr.bf16.mxu0 0
    %2504 = vmatpush2.bf16.msra.mxu0 0
    %2505 = vmatprep.subr.bf16.mxu0 0
    %2506 = vmatpush2.bf16.msra.mxu0 0
    %2507 = vmatprep.subr.bf16.mxu0 0
    %2508 = vmatpush2.bf16.msra.mxu0 0
    %2509 = vmatprep.subr.bf16.mxu0 0
    %2510 = vmatpush2.bf16.msra.mxu0 0
    %2511 = vmatprep.subr.bf16.mxu0 0
    %2512 = vmatpush2.bf16.msra.mxu0 0
    %2513 = vmatprep.subr.bf16.mxu0 0
    %2514 = vmatpush2.bf16.msra.mxu0 0
    %2515 = vmatprep.mubr.bf16.mxu0 0
    %2516 = vmatmul.mubr.bf16.gmra.mxu0 %v2411
    %v2517 = vpop.f32.mrf.mxu0
    %v2518 = vadd.f32 %v2433, %v2517
    %v2519 = vpop.f32.mrf.mxu0
    %v2520 = vpop.f32.mrf.mxu0
    %v2521 = vpop.f32.mrf.mxu0
    %2522 = vdwg.mxu0
    %v2523 = vtanh.pop %v2518
    %v2524 = vld [vmem:[%s1] sm:$0xf]
    %v2525 = vadd.f32 %v2523, %v2524
    %v2526 = vsub.f32 %v2525, -1.0
    %v2527 = vrcp.pop 0.6666667
    %v2528 = vmul.f32 %v2526, %v2527
    %v2529 = vround.ne.pseudo %v2528
    %v2530 = vmax.f32 %v2529, 0.0
    %v2531 = vmin.f32 %v2530, 3.0
    %v2532 = vmul.f32 %v2531, 0.6666667
    %v2533 = vadd.f32 %v2532, -1.0
    %vm2534 = vcmask 60416
    %2535 = vst.msk [vmem:[#allocation2] sm:$0xf] %vm2534, %v2533
    // Predicated region
    $region50: #{encoder_mnist_forward.1} parent=1 // pred_check
      _
    $region51: #{encoder_mnist_forward.1} parent=1 // pred_check_branch
      %2537 = sbr.rel (0) target = $region53
    $region52: #{encoder_mnist_forward.1} parent=1 // pred_region
      %s2539 = ssub.s32 64, 64
      %2540 = vsyncadd [#allocation3], %s2539
      %s2542 = sshll.u32 [#allocation2], 4
      %s2543 = int_to_ptr.vmem [resolvable:$true] %s2542
      %2545 = dma.vmem_to_hbm [thread:$0]  %s2543, 64, %s12, [#allocation3]
    $region53: #{encoder_mnist_forward.1} parent=1 // pred_fallthru
      _
    // Predicated region
    $region54: #{encoder_mnist_forward.1} parent=1 // pred_check
      _
    $region55: #{encoder_mnist_forward.1} parent=1 // pred_check_branch
      %2547 = sbr.rel (0) target = $region57
    $region56: #{encoder_mnist_forward.1} parent=1 // pred_region
      %2548 = dma.done [#allocation3], 64
    $region57: #{encoder_mnist_forward.1} parent=1 // pred_fallthru
      _
    %2549 = vsyncpa [#allocation3], 1

</llo_original>
